<compile_context>
chip_gen: v7x
topology: tpu7x:2x2x1
jax: 0.10.0
libtpu: 0.0.40
codegen_flags: <defaults>
</compile_context>

<pallas_src>
import jax
import jax.numpy as jnp
from jax import lax
from jax.experimental import pallas as pl
from jax.experimental.pallas import tpu as pltpu


def _gru_head_kernel(x_ref, wi_ref, wh_ref, bgi_ref, bhn_ref,
                     w1_ref, b1_ref, wc_ref, bc_ref,
                     result_ref, feat_ref, gi_scratch):
    """Fused GRU (1 layer, h0=0) + fc1 + leaky_relu(0.2) + classifier.

    x_ref      : (T*Bp, Din)  time-major input, batch padded to Bp (mult. of 8)
    wi_ref     : (Din, 3H)    input-side gate weights, columns [r | z | n]
    wh_ref     : (H, 3H)      hidden-side gate weights, columns [r | z | n]
    bgi_ref    : (1, 3H)      b_ih + [b_hr, b_hz, 0]  (folded biases)
    bhn_ref    : (1, H)       b_hn (must stay inside the r*(.) term)
    w1_ref/b1_ref : fc1;  wc_ref/bc_ref : classifier
    gi_scratch : (T*Bp, 3H)   VMEM scratch holding precomputed input gates
    """
    TB, _ = x_ref.shape
    Bp = feat_ref.shape[0]
    H = wh_ref.shape[0]
    T = TB // Bp

    # (1) One large, well-shaped MXU matmul for ALL timesteps' input gates.
    gi_scratch[...] = (
        jnp.dot(x_ref[...], wi_ref[...], preferred_element_type=jnp.float32)
        + bgi_ref[...]
    )

    wh = wh_ref[...]           # (H, 3H), loaded into vregs once
    bhn = bhn_ref[...]         # (1, H), hoisted out of the loop

    # (2) Serial recurrence: h carried in vregs, one fused (H,3H) matmul/step.
    def step(t, h):
        start = pl.multiple_of(t * Bp, Bp)
        gi_t = gi_scratch[pl.ds(start, Bp), :]                        # (Bp, 3H)
        gh = jnp.dot(h, wh, preferred_element_type=jnp.float32)       # (Bp, 3H)
        r = jax.nn.sigmoid(gi_t[:, 0:H] + gh[:, 0:H])
        z = jax.nn.sigmoid(gi_t[:, H:2 * H] + gh[:, H:2 * H])
        n = jnp.tanh(gi_t[:, 2 * H:3 * H] + r * (gh[:, 2 * H:3 * H] + bhn))
        # (1-z)*n + z*h  ==  n + z*(h - n)   (one fewer VPU mul per step)
        return n + z * (h - n)

    h0 = jnp.zeros((Bp, H), jnp.float32)
    unroll = True if T <= 32 else 4          # full unroll for short sequences
    h_last = lax.fori_loop(0, T, step, h0, unroll=unroll)

    # (3) Head: fc1 + leaky_relu(0.2) + classifier (MXU + VPU, one shot).
    pre = jnp.dot(h_last, w1_ref[...], preferred_element_type=jnp.float32) + b1_ref[...]
    feat = jnp.where(pre > 0, pre, 0.2 * pre)
    feat_ref[...] = feat.astype(feat_ref.dtype)
    out = jnp.dot(feat, wc_ref[...], preferred_element_type=jnp.float32) + bc_ref[...]
    result_ref[...] = out.astype(result_ref.dtype)


def model_forward(feature, params):
    """feature: (B, input_dim, T) float32. Returns (result, feat_inter)."""
    B, Din, T = feature.shape
    H = params["fc1_w"].shape[0]
    C = params["cls_w"].shape[0]
    Bp = max(8, ((B + 7) // 8) * 8)          # pad batch to a full sublane tile

    w_ih, w_hh = params["w_ih"], params["w_hh"]          # (3H, Din), (3H, H)
    b_ih, b_hh = params["b_ih"], params["b_hh"]          # (3H,), (3H,)

    # Gate order in PyTorch GRU rows is [r, z, n]; transpose for x @ W layout.
    wi = w_ih.T.astype(jnp.float32)                      # (Din, 3H)
    wh = w_hh.T.astype(jnp.float32)                      # (H, 3H)
    # Fold b_ih (+ b_hr, b_hz) into the precomputed bias; keep b_hn separate.
    bgi = (b_ih + jnp.concatenate([b_hh[:2 * H], jnp.zeros((H,), b_hh.dtype)])
           ).reshape(1, 3 * H).astype(jnp.float32)
    bhn = b_hh[2 * H:3 * H].reshape(1, H).astype(jnp.float32)
    w1 = params["fc1_w"].T.astype(jnp.float32)           # (H, H)
    b1 = params["fc1_b"].reshape(1, H).astype(jnp.float32)
    wc = params["cls_w"].T.astype(jnp.float32)           # (H, C)
    bc = params["cls_b"].reshape(1, C).astype(jnp.float32)

    # (B, Din, T) -> time-major (T, B, Din) -> pad batch -> flatten (T*Bp, Din).
    # TODO(synk): at production scale, fold this transpose into the GI matmul
    # (or tile the time axis with a grid) to avoid one HBM round-trip of x.
    x_tm = jnp.transpose(feature, (2, 0, 1)).astype(jnp.float32)
    if Bp != B:
        x_tm = jnp.pad(x_tm, ((0, 0), (0, Bp - B), (0, 0)))
    x2d = x_tm.reshape(T * Bp, Din)

    vmem = pl.BlockSpec(memory_space=pltpu.MemorySpace.VMEM)
    result, feat = pl.pallas_call(
        _gru_head_kernel,
        out_shape=(jax.ShapeDtypeStruct((Bp, C), jnp.float32),
                   jax.ShapeDtypeStruct((Bp, H), jnp.float32)),
        in_specs=[vmem] * 9,
        out_specs=(vmem, vmem),
        scratch_shapes=[pltpu.VMEM((T * Bp, 3 * H), jnp.float32)],
    )(x2d, wi, wh, bgi, bhn, w1, b1, wc, bc)
    return result[:B], feat[:B]


# ---------------- pure-JAX reference (for correctness check) ----------------
def model_forward_ref(feature, params):
    B, Din, T = feature.shape
    H = params["fc1_w"].shape[0]
    w_ih, w_hh = params["w_ih"], params["w_hh"]
    b_ih, b_hh = params["b_ih"], params["b_hh"]
    x = jnp.transpose(feature, (0, 2, 1))     # (B, T, Din)

    def step(h, x_t):
        gi = x_t @ w_ih.T + b_ih
        gh = h @ w_hh.T + b_hh
        i_r, i_z, i_n = gi[:, :H], gi[:, H:2 * H], gi[:, 2 * H:]
        h_r, h_z, h_n = gh[:, :H], gh[:, H:2 * H], gh[:, 2 * H:]
        r = jax.nn.sigmoid(i_r + h_r)
        z = jax.nn.sigmoid(i_z + h_z)
        n = jnp.tanh(i_n + r * h_n)
        h_new = (1.0 - z) * n + z * h
        return h_new, None

    h0 = jnp.zeros((B, H), jnp.float32)
    h_last, _ = lax.scan(step, h0, jnp.transpose(x, (1, 0, 2)))
    pre = h_last @ params["fc1_w"].T + params["fc1_b"]
    feat = jnp.where(pre > 0, pre, 0.2 * pre)
    result = feat @ params["cls_w"].T + params["cls_b"]
    return result, feat


if __name__ == "__main__":
    # small shapes consistent with the module's forward
    B, Din, T, H, C = 2, 16, 8, 32, 8

    key = jax.random.PRNGKey(0)
    keys = jax.random.split(key, 10)
    scale = 1.0 / jnp.sqrt(H)
    params = {
        "w_ih": jax.random.uniform(keys[0], (3 * H, Din), jnp.float32, -scale, scale),
        "w_hh": jax.random.uniform(keys[1], (3 * H, H), jnp.float32, -scale, scale),
        "b_ih": jax.random.uniform(keys[2], (3 * H,), jnp.float32, -scale, scale),
        "b_hh": jax.random.uniform(keys[3], (3 * H,), jnp.float32, -scale, scale),
        "fc1_w": jax.random.uniform(keys[4], (H, H), jnp.float32, -scale, scale),
        "fc1_b": jax.random.uniform(keys[5], (H,), jnp.float32, -scale, scale),
        "cls_w": jax.random.uniform(keys[6], (C, H), jnp.float32, -scale, scale),
        "cls_b": jax.random.uniform(keys[7], (C,), jnp.float32, -scale, scale),
    }
    feature = jax.random.normal(keys[8], (B, Din, T), jnp.float32)

    result, feat = model_forward(feature, params)
    jax.block_until_ready((result, feat))

    result_ref, feat_ref = model_forward_ref(feature, params)
    assert result.shape == (B, C) and feat.shape == (B, H)
    assert jnp.allclose(result, result_ref, atol=1e-5, rtol=1e-5)
    assert jnp.allclose(feat, feat_ref, atol=1e-5, rtol=1e-5)

    print("KERNEL_OK")
</pallas_src>

<mosaic_0001>
module attributes {stable_mosaic.version = 11 : i64} {
  func.func @_gru_head_kernel(%arg0: memref<64x16xf32, #tpu.memory_space<vmem>>, %arg1: memref<16x96xf32, #tpu.memory_space<vmem>>, %arg2: memref<32x96xf32, #tpu.memory_space<vmem>>, %arg3: memref<1x96xf32, #tpu.memory_space<vmem>>, %arg4: memref<1x32xf32, #tpu.memory_space<vmem>>, %arg5: memref<32x32xf32, #tpu.memory_space<vmem>>, %arg6: memref<1x32xf32, #tpu.memory_space<vmem>>, %arg7: memref<32x8xf32, #tpu.memory_space<vmem>>, %arg8: memref<1x8xf32, #tpu.memory_space<vmem>>, %arg9: memref<8x8xf32, #tpu.memory_space<vmem>>, %arg10: memref<8x32xf32, #tpu.memory_space<vmem>>, %arg11: memref<64x96xf32, #tpu.memory_space<vmem>>) attributes {dimension_semantics = [], scalar_prefetch = 0 : i64, scratch_operands = 1 : i64, tpu.core_type = #tpu.core_type<tc>} {
    %c0 = arith.constant 0 : index
    %c0_0 = arith.constant 0 : index
    %0 = vector.load %arg0[%c0, %c0_0] : memref<64x16xf32, #tpu.memory_space<vmem>>, vector<64x16xf32>
    %c0_1 = arith.constant 0 : index
    %c0_2 = arith.constant 0 : index
    %1 = vector.load %arg1[%c0_1, %c0_2] : memref<16x96xf32, #tpu.memory_space<vmem>>, vector<16x96xf32>
    %cst = arith.constant dense<0.000000e+00> : vector<64x96xf32>
    %2 = tpu.matmul %0, %1, %cst {dimension_numbers = #tpu.dot_dimension_numbers<[1], [0], [0], [1], [0, 0, 1, 1], [], []>} : vector<64x16xf32>, vector<16x96xf32>, vector<64x96xf32> -> vector<64x96xf32>
    %c0_3 = arith.constant 0 : index
    %c0_4 = arith.constant 0 : index
    %3 = vector.load %arg3[%c0_3, %c0_4] : memref<1x96xf32, #tpu.memory_space<vmem>>, vector<1x96xf32>
    %4 = vector.broadcast %3 : vector<1x96xf32> to vector<64x96xf32>
    %5 = arith.addf %2, %4 : vector<64x96xf32>
    %c0_5 = arith.constant 0 : index
    %c0_6 = arith.constant 0 : index
    %6 = vector.load %arg11[%c0_5, %c0_6] : memref<64x96xf32, #tpu.memory_space<vmem>>, vector<64x96xf32>
    tpu.vector_store %arg11[%c0_5, %c0_6], %5 {strides = array<i32>} : memref<64x96xf32, #tpu.memory_space<vmem>>, vector<64x96xf32>,
    %c0_7 = arith.constant 0 : index
    %c0_8 = arith.constant 0 : index
    %7 = vector.load %arg2[%c0_7, %c0_8] : memref<32x96xf32, #tpu.memory_space<vmem>>, vector<32x96xf32>
    %c0_9 = arith.constant 0 : index
    %c0_10 = arith.constant 0 : index
    %8 = vector.load %arg4[%c0_9, %c0_10] : memref<1x32xf32, #tpu.memory_space<vmem>>, vector<1x32xf32>
    %cst_11 = arith.constant 0.000000e+00 : f32
    %9 = vector.broadcast %cst_11 : f32 to vector<8x32xf32>
    %c0_i32 = arith.constant 0 : i32
    %c8_i32 = arith.constant 8 : i32
    %10 = arith.muli %c0_i32, %c8_i32 : i32
    %11 = tpu.assume_multiple %10, 8 : i32
    %12 = arith.index_cast %11 : i32 to index
    %c0_12 = arith.constant 0 : index
    %13 = vector.load %arg11[%12, %c0_12] : memref<64x96xf32, #tpu.memory_space<vmem>>, vector<8x96xf32>
    %cst_13 = arith.constant dense<0.000000e+00> : vector<8x96xf32>
    %14 = tpu.matmul %9, %7, %cst_13 {dimension_numbers = #tpu.dot_dimension_numbers<[1], [0], [0], [1], [0, 0, 1, 1], [], []>} : vector<8x32xf32>, vector<32x96xf32>, vector<8x96xf32> -> vector<8x96xf32>
    %15 = vector.extract_strided_slice %13 {offsets = [0, 0], sizes = [8, 32], strides = [1, 1]} : vector<8x96xf32> to vector<8x32xf32>
    %16 = vector.extract_strided_slice %14 {offsets = [0, 0], sizes = [8, 32], strides = [1, 1]} : vector<8x96xf32> to vector<8x32xf32>
    %17 = arith.addf %15, %16 : vector<8x32xf32>
    %18 = arith.negf %17 : vector<8x32xf32>
    %19 = math.exp %18 : vector<8x32xf32>
    %cst_14 = arith.constant 1.000000e+00 : f32
    %20 = vector.broadcast %cst_14 : f32 to vector<8x32xf32>
    %21 = arith.addf %20, %19 : vector<8x32xf32>
    %22 = arith.divf %20, %21 : vector<8x32xf32>
    %23 = vector.extract_strided_slice %13 {offsets = [0, 32], sizes = [8, 32], strides = [1, 1]} : vector<8x96xf32> to vector<8x32xf32>
    %24 = vector.extract_strided_slice %14 {offsets = [0, 32], sizes = [8, 32], strides = [1, 1]} : vector<8x96xf32> to vector<8x32xf32>
    %25 = arith.addf %23, %24 : vector<8x32xf32>
    %26 = arith.negf %25 : vector<8x32xf32>
    %27 = math.exp %26 : vector<8x32xf32>
    %cst_15 = arith.constant 1.000000e+00 : f32
    %28 = vector.broadcast %cst_15 : f32 to vector<8x32xf32>
    %29 = arith.addf %28, %27 : vector<8x32xf32>
    %30 = arith.divf %28, %29 : vector<8x32xf32>
    %31 = vector.extract_strided_slice %13 {offsets = [0, 64], sizes = [8, 32], strides = [1, 1]} : vector<8x96xf32> to vector<8x32xf32>
    %32 = vector.extract_strided_slice %14 {offsets = [0, 64], sizes = [8, 32], strides = [1, 1]} : vector<8x96xf32> to vector<8x32xf32>
    %33 = vector.broadcast %8 : vector<1x32xf32> to vector<8x32xf32>
    %34 = arith.addf %32, %33 : vector<8x32xf32>
    %35 = arith.mulf %22, %34 : vector<8x32xf32>
    %36 = arith.addf %31, %35 : vector<8x32xf32>
    %37 = math.tanh %36 : vector<8x32xf32>
    %38 = arith.subf %9, %37 : vector<8x32xf32>
    %39 = arith.mulf %30, %38 : vector<8x32xf32>
    %40 = arith.addf %37, %39 : vector<8x32xf32>
    %c1_i32 = arith.constant 1 : i32
    %c8_i32_16 = arith.constant 8 : i32
    %41 = arith.muli %c1_i32, %c8_i32_16 : i32
    %42 = tpu.assume_multiple %41, 8 : i32
    %43 = arith.index_cast %42 : i32 to index
    %c0_17 = arith.constant 0 : index
    %44 = vector.load %arg11[%43, %c0_17] : memref<64x96xf32, #tpu.memory_space<vmem>>, vector<8x96xf32>
    %cst_18 = arith.constant dense<0.000000e+00> : vector<8x96xf32>
    %45 = tpu.matmul %40, %7, %cst_18 {dimension_numbers = #tpu.dot_dimension_numbers<[1], [0], [0], [1], [0, 0, 1, 1], [], []>} : vector<8x32xf32>, vector<32x96xf32>, vector<8x96xf32> -> vector<8x96xf32>
    %46 = vector.extract_strided_slice %44 {offsets = [0, 0], sizes = [8, 32], strides = [1, 1]} : vector<8x96xf32> to vector<8x32xf32>
    %47 = vector.extract_strided_slice %45 {offsets = [0, 0], sizes = [8, 32], strides = [1, 1]} : vector<8x96xf32> to vector<8x32xf32>
    %48 = arith.addf %46, %47 : vector<8x32xf32>
    %49 = arith.negf %48 : vector<8x32xf32>
    %50 = math.exp %49 : vector<8x32xf32>
    %cst_19 = arith.constant 1.000000e+00 : f32
    %51 = vector.broadcast %cst_19 : f32 to vector<8x32xf32>
    %52 = arith.addf %51, %50 : vector<8x32xf32>
    %53 = arith.divf %51, %52 : vector<8x32xf32>
    %54 = vector.extract_strided_slice %44 {offsets = [0, 32], sizes = [8, 32], strides = [1, 1]} : vector<8x96xf32> to vector<8x32xf32>
    %55 = vector.extract_strided_slice %45 {offsets = [0, 32], sizes = [8, 32], strides = [1, 1]} : vector<8x96xf32> to vector<8x32xf32>
    %56 = arith.addf %54, %55 : vector<8x32xf32>
    %57 = arith.negf %56 : vector<8x32xf32>
    %58 = math.exp %57 : vector<8x32xf32>
    %cst_20 = arith.constant 1.000000e+00 : f32
    %59 = vector.broadcast %cst_20 : f32 to vector<8x32xf32>
    %60 = arith.addf %59, %58 : vector<8x32xf32>
    %61 = arith.divf %59, %60 : vector<8x32xf32>
    %62 = vector.extract_strided_slice %44 {offsets = [0, 64], sizes = [8, 32], strides = [1, 1]} : vector<8x96xf32> to vector<8x32xf32>
    %63 = vector.extract_strided_slice %45 {offsets = [0, 64], sizes = [8, 32], strides = [1, 1]} : vector<8x96xf32> to vector<8x32xf32>
    %64 = vector.broadcast %8 : vector<1x32xf32> to vector<8x32xf32>
    %65 = arith.addf %63, %64 : vector<8x32xf32>
    %66 = arith.mulf %53, %65 : vector<8x32xf32>
    %67 = arith.addf %62, %66 : vector<8x32xf32>
    %68 = math.tanh %67 : vector<8x32xf32>
    %69 = arith.subf %40, %68 : vector<8x32xf32>
    %70 = arith.mulf %61, %69 : vector<8x32xf32>
    %71 = arith.addf %68, %70 : vector<8x32xf32>
    %c2_i32 = arith.constant 2 : i32
    %c8_i32_21 = arith.constant 8 : i32
    %72 = arith.muli %c2_i32, %c8_i32_21 : i32
    %73 = tpu.assume_multiple %72, 8 : i32
    %74 = arith.index_cast %73 : i32 to index
    %c0_22 = arith.constant 0 : index
    %75 = vector.load %arg11[%74, %c0_22] : memref<64x96xf32, #tpu.memory_space<vmem>>, vector<8x96xf32>
    %cst_23 = arith.constant dense<0.000000e+00> : vector<8x96xf32>
    %76 = tpu.matmul %71, %7, %cst_23 {dimension_numbers = #tpu.dot_dimension_numbers<[1], [0], [0], [1], [0, 0, 1, 1], [], []>} : vector<8x32xf32>, vector<32x96xf32>, vector<8x96xf32> -> vector<8x96xf32>
    %77 = vector.extract_strided_slice %75 {offsets = [0, 0], sizes = [8, 32], strides = [1, 1]} : vector<8x96xf32> to vector<8x32xf32>
    %78 = vector.extract_strided_slice %76 {offsets = [0, 0], sizes = [8, 32], strides = [1, 1]} : vector<8x96xf32> to vector<8x32xf32>
    %79 = arith.addf %77, %78 : vector<8x32xf32>
    %80 = arith.negf %79 : vector<8x32xf32>
    %81 = math.exp %80 : vector<8x32xf32>
    %cst_24 = arith.constant 1.000000e+00 : f32
    %82 = vector.broadcast %cst_24 : f32 to vector<8x32xf32>
    %83 = arith.addf %82, %81 : vector<8x32xf32>
    %84 = arith.divf %82, %83 : vector<8x32xf32>
    %85 = vector.extract_strided_slice %75 {offsets = [0, 32], sizes = [8, 32], strides = [1, 1]} : vector<8x96xf32> to vector<8x32xf32>
    %86 = vector.extract_strided_slice %76 {offsets = [0, 32], sizes = [8, 32], strides = [1, 1]} : vector<8x96xf32> to vector<8x32xf32>
    %87 = arith.addf %85, %86 : vector<8x32xf32>
    %88 = arith.negf %87 : vector<8x32xf32>
    %89 = math.exp %88 : vector<8x32xf32>
    %cst_25 = arith.constant 1.000000e+00 : f32
    %90 = vector.broadcast %cst_25 : f32 to vector<8x32xf32>
    %91 = arith.addf %90, %89 : vector<8x32xf32>
    %92 = arith.divf %90, %91 : vector<8x32xf32>
    %93 = vector.extract_strided_slice %75 {offsets = [0, 64], sizes = [8, 32], strides = [1, 1]} : vector<8x96xf32> to vector<8x32xf32>
    %94 = vector.extract_strided_slice %76 {offsets = [0, 64], sizes = [8, 32], strides = [1, 1]} : vector<8x96xf32> to vector<8x32xf32>
    %95 = vector.broadcast %8 : vector<1x32xf32> to vector<8x32xf32>
    %96 = arith.addf %94, %95 : vector<8x32xf32>
    %97 = arith.mulf %84, %96 : vector<8x32xf32>
    %98 = arith.addf %93, %97 : vector<8x32xf32>
    %99 = math.tanh %98 : vector<8x32xf32>
    %100 = arith.subf %71, %99 : vector<8x32xf32>
    %101 = arith.mulf %92, %100 : vector<8x32xf32>
    %102 = arith.addf %99, %101 : vector<8x32xf32>
    %c3_i32 = arith.constant 3 : i32
    %c8_i32_26 = arith.constant 8 : i32
    %103 = arith.muli %c3_i32, %c8_i32_26 : i32
    %104 = tpu.assume_multiple %103, 8 : i32
    %105 = arith.index_cast %104 : i32 to index
    %c0_27 = arith.constant 0 : index
    %106 = vector.load %arg11[%105, %c0_27] : memref<64x96xf32, #tpu.memory_space<vmem>>, vector<8x96xf32>
    %cst_28 = arith.constant dense<0.000000e+00> : vector<8x96xf32>
    %107 = tpu.matmul %102, %7, %cst_28 {dimension_numbers = #tpu.dot_dimension_numbers<[1], [0], [0], [1], [0, 0, 1, 1], [], []>} : vector<8x32xf32>, vector<32x96xf32>, vector<8x96xf32> -> vector<8x96xf32>
    %108 = vector.extract_strided_slice %106 {offsets = [0, 0], sizes = [8, 32], strides = [1, 1]} : vector<8x96xf32> to vector<8x32xf32>
    %109 = vector.extract_strided_slice %107 {offsets = [0, 0], sizes = [8, 32], strides = [1, 1]} : vector<8x96xf32> to vector<8x32xf32>
    %110 = arith.addf %108, %109 : vector<8x32xf32>
    %111 = arith.negf %110 : vector<8x32xf32>
    %112 = math.exp %111 : vector<8x32xf32>
    %cst_29 = arith.constant 1.000000e+00 : f32
    %113 = vector.broadcast %cst_29 : f32 to vector<8x32xf32>
    %114 = arith.addf %113, %112 : vector<8x32xf32>
    %115 = arith.divf %113, %114 : vector<8x32xf32>
    %116 = vector.extract_strided_slice %106 {offsets = [0, 32], sizes = [8, 32], strides = [1, 1]} : vector<8x96xf32> to vector<8x32xf32>
    %117 = vector.extract_strided_slice %107 {offsets = [0, 32], sizes = [8, 32], strides = [1, 1]} : vector<8x96xf32> to vector<8x32xf32>
    %118 = arith.addf %116, %117 : vector<8x32xf32>
    %119 = arith.negf %118 : vector<8x32xf32>
    %120 = math.exp %119 : vector<8x32xf32>
    %cst_30 = arith.constant 1.000000e+00 : f32
    %121 = vector.broadcast %cst_30 : f32 to vector<8x32xf32>
    %122 = arith.addf %121, %120 : vector<8x32xf32>
    %123 = arith.divf %121, %122 : vector<8x32xf32>
    %124 = vector.extract_strided_slice %106 {offsets = [0, 64], sizes = [8, 32], strides = [1, 1]} : vector<8x96xf32> to vector<8x32xf32>
    %125 = vector.extract_strided_slice %107 {offsets = [0, 64], sizes = [8, 32], strides = [1, 1]} : vector<8x96xf32> to vector<8x32xf32>
    %126 = vector.broadcast %8 : vector<1x32xf32> to vector<8x32xf32>
    %127 = arith.addf %125, %126 : vector<8x32xf32>
    %128 = arith.mulf %115, %127 : vector<8x32xf32>
    %129 = arith.addf %124, %128 : vector<8x32xf32>
    %130 = math.tanh %129 : vector<8x32xf32>
    %131 = arith.subf %102, %130 : vector<8x32xf32>
    %132 = arith.mulf %123, %131 : vector<8x32xf32>
    %133 = arith.addf %130, %132 : vector<8x32xf32>
    %c4_i32 = arith.constant 4 : i32
    %c8_i32_31 = arith.constant 8 : i32
    %134 = arith.muli %c4_i32, %c8_i32_31 : i32
    %135 = tpu.assume_multiple %134, 8 : i32
    %136 = arith.index_cast %135 : i32 to index
    %c0_32 = arith.constant 0 : index
    %137 = vector.load %arg11[%136, %c0_32] : memref<64x96xf32, #tpu.memory_space<vmem>>, vector<8x96xf32>
    %cst_33 = arith.constant dense<0.000000e+00> : vector<8x96xf32>
    %138 = tpu.matmul %133, %7, %cst_33 {dimension_numbers = #tpu.dot_dimension_numbers<[1], [0], [0], [1], [0, 0, 1, 1], [], []>} : vector<8x32xf32>, vector<32x96xf32>, vector<8x96xf32> -> vector<8x96xf32>
    %139 = vector.extract_strided_slice %137 {offsets = [0, 0], sizes = [8, 32], strides = [1, 1]} : vector<8x96xf32> to vector<8x32xf32>
    %140 = vector.extract_strided_slice %138 {offsets = [0, 0], sizes = [8, 32], strides = [1, 1]} : vector<8x96xf32> to vector<8x32xf32>
    %141 = arith.addf %139, %140 : vector<8x32xf32>
    %142 = arith.negf %141 : vector<8x32xf32>
    %143 = math.exp %142 : vector<8x32xf32>
    %cst_34 = arith.constant 1.000000e+00 : f32
    %144 = vector.broadcast %cst_34 : f32 to vector<8x32xf32>
    %145 = arith.addf %144, %143 : vector<8x32xf32>
    %146 = arith.divf %144, %145 : vector<8x32xf32>
    %147 = vector.extract_strided_slice %137 {offsets = [0, 32], sizes = [8, 32], strides = [1, 1]} : vector<8x96xf32> to vector<8x32xf32>
    %148 = vector.extract_strided_slice %138 {offsets = [0, 32], sizes = [8, 32], strides = [1, 1]} : vector<8x96xf32> to vector<8x32xf32>
    %149 = arith.addf %147, %148 : vector<8x32xf32>
    %150 = arith.negf %149 : vector<8x32xf32>
    %151 = math.exp %150 : vector<8x32xf32>
    %cst_35 = arith.constant 1.000000e+00 : f32
    %152 = vector.broadcast %cst_35 : f32 to vector<8x32xf32>
    %153 = arith.addf %152, %151 : vector<8x32xf32>
    %154 = arith.divf %152, %153 : vector<8x32xf32>
    %155 = vector.extract_strided_slice %137 {offsets = [0, 64], sizes = [8, 32], strides = [1, 1]} : vector<8x96xf32> to vector<8x32xf32>
    %156 = vector.extract_strided_slice %138 {offsets = [0, 64], sizes = [8, 32], strides = [1, 1]} : vector<8x96xf32> to vector<8x32xf32>
    %157 = vector.broadcast %8 : vector<1x32xf32> to vector<8x32xf32>
    %158 = arith.addf %156, %157 : vector<8x32xf32>
    %159 = arith.mulf %146, %158 : vector<8x32xf32>
    %160 = arith.addf %155, %159 : vector<8x32xf32>
    %161 = math.tanh %160 : vector<8x32xf32>
    %162 = arith.subf %133, %161 : vector<8x32xf32>
    %163 = arith.mulf %154, %162 : vector<8x32xf32>
    %164 = arith.addf %161, %163 : vector<8x32xf32>
    %c5_i32 = arith.constant 5 : i32
    %c8_i32_36 = arith.constant 8 : i32
    %165 = arith.muli %c5_i32, %c8_i32_36 : i32
    %166 = tpu.assume_multiple %165, 8 : i32
    %167 = arith.index_cast %166 : i32 to index
    %c0_37 = arith.constant 0 : index
    %168 = vector.load %arg11[%167, %c0_37] : memref<64x96xf32, #tpu.memory_space<vmem>>, vector<8x96xf32>
    %cst_38 = arith.constant dense<0.000000e+00> : vector<8x96xf32>
    %169 = tpu.matmul %164, %7, %cst_38 {dimension_numbers = #tpu.dot_dimension_numbers<[1], [0], [0], [1], [0, 0, 1, 1], [], []>} : vector<8x32xf32>, vector<32x96xf32>, vector<8x96xf32> -> vector<8x96xf32>
    %170 = vector.extract_strided_slice %168 {offsets = [0, 0], sizes = [8, 32], strides = [1, 1]} : vector<8x96xf32> to vector<8x32xf32>
    %171 = vector.extract_strided_slice %169 {offsets = [0, 0], sizes = [8, 32], strides = [1, 1]} : vector<8x96xf32> to vector<8x32xf32>
    %172 = arith.addf %170, %171 : vector<8x32xf32>
    %173 = arith.negf %172 : vector<8x32xf32>
    %174 = math.exp %173 : vector<8x32xf32>
    %cst_39 = arith.constant 1.000000e+00 : f32
    %175 = vector.broadcast %cst_39 : f32 to vector<8x32xf32>
    %176 = arith.addf %175, %174 : vector<8x32xf32>
    %177 = arith.divf %175, %176 : vector<8x32xf32>
    %178 = vector.extract_strided_slice %168 {offsets = [0, 32], sizes = [8, 32], strides = [1, 1]} : vector<8x96xf32> to vector<8x32xf32>
    %179 = vector.extract_strided_slice %169 {offsets = [0, 32], sizes = [8, 32], strides = [1, 1]} : vector<8x96xf32> to vector<8x32xf32>
    %180 = arith.addf %178, %179 : vector<8x32xf32>
    %181 = arith.negf %180 : vector<8x32xf32>
    %182 = math.exp %181 : vector<8x32xf32>
    %cst_40 = arith.constant 1.000000e+00 : f32
    %183 = vector.broadcast %cst_40 : f32 to vector<8x32xf32>
    %184 = arith.addf %183, %182 : vector<8x32xf32>
    %185 = arith.divf %183, %184 : vector<8x32xf32>
    %186 = vector.extract_strided_slice %168 {offsets = [0, 64], sizes = [8, 32], strides = [1, 1]} : vector<8x96xf32> to vector<8x32xf32>
    %187 = vector.extract_strided_slice %169 {offsets = [0, 64], sizes = [8, 32], strides = [1, 1]} : vector<8x96xf32> to vector<8x32xf32>
    %188 = vector.broadcast %8 : vector<1x32xf32> to vector<8x32xf32>
    %189 = arith.addf %187, %188 : vector<8x32xf32>
    %190 = arith.mulf %177, %189 : vector<8x32xf32>
    %191 = arith.addf %186, %190 : vector<8x32xf32>
    %192 = math.tanh %191 : vector<8x32xf32>
    %193 = arith.subf %164, %192 : vector<8x32xf32>
    %194 = arith.mulf %185, %193 : vector<8x32xf32>
    %195 = arith.addf %192, %194 : vector<8x32xf32>
    %c6_i32 = arith.constant 6 : i32
    %c8_i32_41 = arith.constant 8 : i32
    %196 = arith.muli %c6_i32, %c8_i32_41 : i32
    %197 = tpu.assume_multiple %196, 8 : i32
    %198 = arith.index_cast %197 : i32 to index
    %c0_42 = arith.constant 0 : index
    %199 = vector.load %arg11[%198, %c0_42] : memref<64x96xf32, #tpu.memory_space<vmem>>, vector<8x96xf32>
    %cst_43 = arith.constant dense<0.000000e+00> : vector<8x96xf32>
    %200 = tpu.matmul %195, %7, %cst_43 {dimension_numbers = #tpu.dot_dimension_numbers<[1], [0], [0], [1], [0, 0, 1, 1], [], []>} : vector<8x32xf32>, vector<32x96xf32>, vector<8x96xf32> -> vector<8x96xf32>
    %201 = vector.extract_strided_slice %199 {offsets = [0, 0], sizes = [8, 32], strides = [1, 1]} : vector<8x96xf32> to vector<8x32xf32>
    %202 = vector.extract_strided_slice %200 {offsets = [0, 0], sizes = [8, 32], strides = [1, 1]} : vector<8x96xf32> to vector<8x32xf32>
    %203 = arith.addf %201, %202 : vector<8x32xf32>
    %204 = arith.negf %203 : vector<8x32xf32>
    %205 = math.exp %204 : vector<8x32xf32>
    %cst_44 = arith.constant 1.000000e+00 : f32
    %206 = vector.broadcast %cst_44 : f32 to vector<8x32xf32>
    %207 = arith.addf %206, %205 : vector<8x32xf32>
    %208 = arith.divf %206, %207 : vector<8x32xf32>
    %209 = vector.extract_strided_slice %199 {offsets = [0, 32], sizes = [8, 32], strides = [1, 1]} : vector<8x96xf32> to vector<8x32xf32>
    %210 = vector.extract_strided_slice %200 {offsets = [0, 32], sizes = [8, 32], strides = [1, 1]} : vector<8x96xf32> to vector<8x32xf32>
    %211 = arith.addf %209, %210 : vector<8x32xf32>
    %212 = arith.negf %211 : vector<8x32xf32>
    %213 = math.exp %212 : vector<8x32xf32>
    %cst_45 = arith.constant 1.000000e+00 : f32
    %214 = vector.broadcast %cst_45 : f32 to vector<8x32xf32>
    %215 = arith.addf %214, %213 : vector<8x32xf32>
    %216 = arith.divf %214, %215 : vector<8x32xf32>
    %217 = vector.extract_strided_slice %199 {offsets = [0, 64], sizes = [8, 32], strides = [1, 1]} : vector<8x96xf32> to vector<8x32xf32>
    %218 = vector.extract_strided_slice %200 {offsets = [0, 64], sizes = [8, 32], strides = [1, 1]} : vector<8x96xf32> to vector<8x32xf32>
    %219 = vector.broadcast %8 : vector<1x32xf32> to vector<8x32xf32>
    %220 = arith.addf %218, %219 : vector<8x32xf32>
    %221 = arith.mulf %208, %220 : vector<8x32xf32>
    %222 = arith.addf %217, %221 : vector<8x32xf32>
    %223 = math.tanh %222 : vector<8x32xf32>
    %224 = arith.subf %195, %223 : vector<8x32xf32>
    %225 = arith.mulf %216, %224 : vector<8x32xf32>
    %226 = arith.addf %223, %225 : vector<8x32xf32>
    %c7_i32 = arith.constant 7 : i32
    %c8_i32_46 = arith.constant 8 : i32
    %227 = arith.muli %c7_i32, %c8_i32_46 : i32
    %228 = tpu.assume_multiple %227, 8 : i32
    %229 = arith.index_cast %228 : i32 to index
    %c0_47 = arith.constant 0 : index
    %230 = vector.load %arg11[%229, %c0_47] : memref<64x96xf32, #tpu.memory_space<vmem>>, vector<8x96xf32>
    %cst_48 = arith.constant dense<0.000000e+00> : vector<8x96xf32>
    %231 = tpu.matmul %226, %7, %cst_48 {dimension_numbers = #tpu.dot_dimension_numbers<[1], [0], [0], [1], [0, 0, 1, 1], [], []>} : vector<8x32xf32>, vector<32x96xf32>, vector<8x96xf32> -> vector<8x96xf32>
    %232 = vector.extract_strided_slice %230 {offsets = [0, 0], sizes = [8, 32], strides = [1, 1]} : vector<8x96xf32> to vector<8x32xf32>
    %233 = vector.extract_strided_slice %231 {offsets = [0, 0], sizes = [8, 32], strides = [1, 1]} : vector<8x96xf32> to vector<8x32xf32>
    %234 = arith.addf %232, %233 : vector<8x32xf32>
    %235 = arith.negf %234 : vector<8x32xf32>
    %236 = math.exp %235 : vector<8x32xf32>
    %cst_49 = arith.constant 1.000000e+00 : f32
    %237 = vector.broadcast %cst_49 : f32 to vector<8x32xf32>
    %238 = arith.addf %237, %236 : vector<8x32xf32>
    %239 = arith.divf %237, %238 : vector<8x32xf32>
    %240 = vector.extract_strided_slice %230 {offsets = [0, 32], sizes = [8, 32], strides = [1, 1]} : vector<8x96xf32> to vector<8x32xf32>
    %241 = vector.extract_strided_slice %231 {offsets = [0, 32], sizes = [8, 32], strides = [1, 1]} : vector<8x96xf32> to vector<8x32xf32>
    %242 = arith.addf %240, %241 : vector<8x32xf32>
    %243 = arith.negf %242 : vector<8x32xf32>
    %244 = math.exp %243 : vector<8x32xf32>
    %cst_50 = arith.constant 1.000000e+00 : f32
    %245 = vector.broadcast %cst_50 : f32 to vector<8x32xf32>
    %246 = arith.addf %245, %244 : vector<8x32xf32>
    %247 = arith.divf %245, %246 : vector<8x32xf32>
    %248 = vector.extract_strided_slice %230 {offsets = [0, 64], sizes = [8, 32], strides = [1, 1]} : vector<8x96xf32> to vector<8x32xf32>
    %249 = vector.extract_strided_slice %231 {offsets = [0, 64], sizes = [8, 32], strides = [1, 1]} : vector<8x96xf32> to vector<8x32xf32>
    %250 = vector.broadcast %8 : vector<1x32xf32> to vector<8x32xf32>
    %251 = arith.addf %249, %250 : vector<8x32xf32>
    %252 = arith.mulf %239, %251 : vector<8x32xf32>
    %253 = arith.addf %248, %252 : vector<8x32xf32>
    %254 = math.tanh %253 : vector<8x32xf32>
    %255 = arith.subf %226, %254 : vector<8x32xf32>
    %256 = arith.mulf %247, %255 : vector<8x32xf32>
    %257 = arith.addf %254, %256 : vector<8x32xf32>
    %c8_i32_51 = arith.constant 8 : i32
    %c0_52 = arith.constant 0 : index
    %c0_53 = arith.constant 0 : index
    %258 = vector.load %arg5[%c0_52, %c0_53] : memref<32x32xf32, #tpu.memory_space<vmem>>, vector<32x32xf32>
    %cst_54 = arith.constant dense<0.000000e+00> : vector<8x32xf32>
    %259 = tpu.matmul %257, %258, %cst_54 {dimension_numbers = #tpu.dot_dimension_numbers<[1], [0], [0], [1], [0, 0, 1, 1], [], []>} : vector<8x32xf32>, vector<32x32xf32>, vector<8x32xf32> -> vector<8x32xf32>
    %c0_55 = arith.constant 0 : index
    %c0_56 = arith.constant 0 : index
    %260 = vector.load %arg6[%c0_55, %c0_56] : memref<1x32xf32, #tpu.memory_space<vmem>>, vector<1x32xf32>
    %261 = vector.broadcast %260 : vector<1x32xf32> to vector<8x32xf32>
    %262 = arith.addf %259, %261 : vector<8x32xf32>
    %cst_57 = arith.constant 0.000000e+00 : f32
    %263 = vector.broadcast %cst_57 : f32 to vector<8x32xf32>
    %264 = arith.cmpf ogt, %262, %263 : vector<8x32xf32>
    %cst_58 = arith.constant 2.000000e-01 : f32
    %265 = vector.broadcast %cst_58 : f32 to vector<8x32xf32>
    %266 = arith.mulf %265, %262 : vector<8x32xf32>
    %267 = arith.select %264, %262, %266 : vector<8x32xi1>, vector<8x32xf32>
    %c0_59 = arith.constant 0 : index
    %c0_60 = arith.constant 0 : index
    %268 = vector.load %arg10[%c0_59, %c0_60] : memref<8x32xf32, #tpu.memory_space<vmem>>, vector<8x32xf32>
    tpu.vector_store %arg10[%c0_59, %c0_60], %267 {strides = array<i32>} : memref<8x32xf32, #tpu.memory_space<vmem>>, vector<8x32xf32>,
    %c0_61 = arith.constant 0 : index
    %c0_62 = arith.constant 0 : index
    %269 = vector.load %arg7[%c0_61, %c0_62] : memref<32x8xf32, #tpu.memory_space<vmem>>, vector<32x8xf32>
    %cst_63 = arith.constant dense<0.000000e+00> : vector<8x8xf32>
    %270 = tpu.matmul %267, %269, %cst_63 {dimension_numbers = #tpu.dot_dimension_numbers<[1], [0], [0], [1], [0, 0, 1, 1], [], []>} : vector<8x32xf32>, vector<32x8xf32>, vector<8x8xf32> -> vector<8x8xf32>
    %c0_64 = arith.constant 0 : index
    %c0_65 = arith.constant 0 : index
    %271 = vector.load %arg8[%c0_64, %c0_65] : memref<1x8xf32, #tpu.memory_space<vmem>>, vector<1x8xf32>
    %272 = vector.broadcast %271 : vector<1x8xf32> to vector<8x8xf32>
    %273 = arith.addf %270, %272 : vector<8x8xf32>
    %c0_66 = arith.constant 0 : index
    %c0_67 = arith.constant 0 : index
    %274 = vector.load %arg9[%c0_66, %c0_67] : memref<8x8xf32, #tpu.memory_space<vmem>>, vector<8x8xf32>
    tpu.vector_store %arg9[%c0_66, %c0_67], %273 {strides = array<i32>} : memref<8x8xf32, #tpu.memory_space<vmem>>, vector<8x8xf32>,
    return
  }
}

</mosaic_0001>

<llo_original>
// kernel: tpu_custom_call.1
$region0: #{tpu_custom_call.1}
  #allocation0 [shape = 'u32[]', space=smem, size = 0x4, offset = 0x4, fixed_abs, tag = 'smem constant byte address 0x4 - core index']
  #allocation1 [shape = 'u32[144,128]{1,0:T(1,128)}', space=vmem, size = 0x12000, scoped, tag = 'internal scratch']
  #allocation2 [shape = 'f32[64,96]{1,0:T(8,128)}', space=vmem, size = 0x8000, scoped, tag = 'scratch operand']
  %s0 = inlined_call_operand.vmem [shape: f32[64,16], index: 0, kind: input, shape index: {}]
  %s1 = inlined_call_operand.vmem [shape: f32[16,96], index: 1, kind: input, shape index: {}]
  %s2 = inlined_call_operand.vmem [shape: f32[32,96], index: 2, kind: input, shape index: {}]
  %s3 = inlined_call_operand.vmem [shape: f32[1,96], index: 3, kind: input, shape index: {}]
  %s4 = inlined_call_operand.vmem [shape: f32[1,32], index: 4, kind: input, shape index: {}]
  %s5 = inlined_call_operand.vmem [shape: f32[32,32], index: 5, kind: input, shape index: {}]
  %s6 = inlined_call_operand.vmem [shape: f32[1,32], index: 6, kind: input, shape index: {}]
  %s7 = inlined_call_operand.vmem [shape: f32[32,8], index: 7, kind: input, shape index: {}]
  %s8 = inlined_call_operand.vmem [shape: f32[1,8], index: 8, kind: input, shape index: {}]
  %s9 = inlined_call_operand.hbm [shape: f32[8,8], index: 9, kind: output, shape index: {0}]
  %s10 = inlined_call_operand.hbm [shape: f32[8,32], index: 10, kind: output, shape index: {1}]
  %11 = xla_tuple %s9, %s10
  %s12 = sld [smem:[#allocation0]]
  $region54: #{tpu_custom_call.1} parent=0
    _
  %s14 = ssub.s32 1, %s12
  %s15 = scalar_select 0, %s14, %s12
  $region1: #{tpu_custom_call.1} parent=0
    #allocation3 [shape = 'u8[4096]{0}', space=vmem, size = 0x1000, scoped, tag = 'output window, operand 0, single buffered']
    #allocation4 [shape = 's32[1]{0}', space=sflag, size = 0x4, scoped, tag = 'scoped memory for tpu_custom_call.1']
    #allocation5 [shape = 'u8[4096]{0}', space=vmem, size = 0x1000, scoped, tag = 'output window, operand 1, single buffered']
    #allocation6 [shape = 's32[1]{0}', space=sflag, size = 0x4, scoped, tag = 'scoped memory for tpu_custom_call.1']
    %16 = vsyncpa [#allocation4], 0
    %17 = vsyncpa [#allocation6], 0
    // Predicated region
    $region2: #{tpu_custom_call.1} parent=1 // pred_check
      _
    $region3: #{tpu_custom_call.1} parent=1 // pred_check_branch
      %19 = sbr.rel (0) target = $region5
    $region4: #{tpu_custom_call.1} parent=1 // pred_region
      _
    $region5: #{tpu_custom_call.1} parent=1 // pred_fallthru
      _
    // Predicated region
    $region6: #{tpu_custom_call.1} parent=1 // pred_check
      _
    $region7: #{tpu_custom_call.1} parent=1 // pred_check_branch
      %21 = sbr.rel (0) target = $region9
    $region8: #{tpu_custom_call.1} parent=1 // pred_region
      _
    $region9: #{tpu_custom_call.1} parent=1 // pred_fallthru
      _
    // Predicated region
    $region10: #{tpu_custom_call.1} parent=1 // pred_check
      _
    $region11: #{tpu_custom_call.1} parent=1 // pred_check_branch
      %23 = sbr.rel (0) target = $region13
    $region12: #{tpu_custom_call.1} parent=1 // pred_region
      _
    $region13: #{tpu_custom_call.1} parent=1 // pred_fallthru
      _
    // Predicated region
    $region14: #{tpu_custom_call.1} parent=1 // pred_check
      _
    $region15: #{tpu_custom_call.1} parent=1 // pred_check_branch
      %25 = sbr.rel (0) target = $region17
    $region16: #{tpu_custom_call.1} parent=1 // pred_region
      _
    $region17: #{tpu_custom_call.1} parent=1 // pred_fallthru
      _
    // Predicated region
    $region18: #{tpu_custom_call.1} parent=1 // pred_check
      _
    $region19: #{tpu_custom_call.1} parent=1 // pred_check_branch
      %27 = sbr.rel (0) target = $region21
    $region20: #{tpu_custom_call.1} parent=1 // pred_region
      _
    $region21: #{tpu_custom_call.1} parent=1 // pred_fallthru
      _
    // Predicated region
    $region22: #{tpu_custom_call.1} parent=1 // pred_check
      _
    $region23: #{tpu_custom_call.1} parent=1 // pred_check_branch
      %29 = sbr.rel (0) target = $region25
    $region24: #{tpu_custom_call.1} parent=1 // pred_region
      _
    $region25: #{tpu_custom_call.1} parent=1 // pred_fallthru
      _
    // Predicated region
    $region26: #{tpu_custom_call.1} parent=1 // pred_check
      _
    $region27: #{tpu_custom_call.1} parent=1 // pred_check_branch
      %31 = sbr.rel (0) target = $region29
    $region28: #{tpu_custom_call.1} parent=1 // pred_region
      _
    $region29: #{tpu_custom_call.1} parent=1 // pred_fallthru
      _
    // Predicated region
    $region30: #{tpu_custom_call.1} parent=1 // pred_check
      _
    $region31: #{tpu_custom_call.1} parent=1 // pred_check_branch
      %33 = sbr.rel (0) target = $region33
    $region32: #{tpu_custom_call.1} parent=1 // pred_region
      _
    $region33: #{tpu_custom_call.1} parent=1 // pred_fallthru
      _
    // Predicated region
    $region34: #{tpu_custom_call.1} parent=1 // pred_check
      _
    $region35: #{tpu_custom_call.1} parent=1 // pred_check_branch
      %35 = sbr.rel (0) target = $region37
    $region36: #{tpu_custom_call.1} parent=1 // pred_region
      _
    $region37: #{tpu_custom_call.1} parent=1 // pred_fallthru
      _
    %v36 = vld [vmem:[%s0] sm:$0xff]
    %v37 = vld [vmem:[%s0 + $0x8] sm:$0xff]
    %v38 = vld [vmem:[%s0 + $0x10] sm:$0xff]
    %v39 = vld [vmem:[%s0 + $0x18] sm:$0xff]
    %v40 = vld [vmem:[%s0 + $0x20] sm:$0xff]
    %v41 = vld [vmem:[%s0 + $0x28] sm:$0xff]
    %v42 = vld [vmem:[%s0 + $0x30] sm:$0xff]
    %v43 = vld [vmem:[%s0 + $0x38] sm:$0xff]
    %v44 = vld [vmem:[%s1] sm:$0xff]
    %v45 = vld [vmem:[%s1 + $0x8] sm:$0xff]
    %v46 = vld [vmem:[%s3] sm:$0x1]
    %v48 = vlaneseq
    %v49 = vshrl.u32 %v48, 7
    %v50 = vsub.s32 0, %v49
    %v51 = vrot.slane %v46, %v50
    %vm53 = vcmask 130048
    %v55 = vsel %vm53, %v36, 0
    %v58 = vsel %vm53, %v37, 0
    %v61 = vsel %vm53, %v38, 0
    %v64 = vsel %vm53, %v39, 0
    %v67 = vsel %vm53, %v40, 0
    %v70 = vsel %vm53, %v41, 0
    %v73 = vsel %vm53, %v42, 0
    %v76 = vsel %vm53, %v43, 0
    %78 = vmatprep.subr.mxu0 0.0
    %79 = vmatpush1.msra.mxu0 %v44
    %80 = vmatprep.subr.mxu0 0.0
    %81 = vmatpush1.msra.mxu0 %v45
    %82 = vmatprep.subr.mxu0 0.0
    %83 = vmatpush1.msra.mxu0 0.0
    %84 = vmatprep.subr.mxu0 0.0
    %85 = vmatpush1.msra.mxu0 0.0
    %86 = vmatprep.subr.mxu0 0.0
    %87 = vmatpush1.msra.mxu0 0.0
    %88 = vmatprep.subr.mxu0 0.0
    %89 = vmatpush1.msra.mxu0 0.0
    %90 = vmatprep.subr.mxu0 0.0
    %91 = vmatpush1.msra.mxu0 0.0
    %92 = vmatprep.subr.mxu0 0.0
    %93 = vmatpush1.msra.mxu0 0.0
    %94 = vmatprep.subr.mxu0 0.0
    %95 = vmatpush1.msra.mxu0 0.0
    %96 = vmatprep.subr.mxu0 0.0
    %97 = vmatpush1.msra.mxu0 0.0
    %98 = vmatprep.subr.mxu0 0.0
    %99 = vmatpush1.msra.mxu0 0.0
    %100 = vmatprep.subr.mxu0 0.0
    %101 = vmatpush1.msra.mxu0 0.0
    %102 = vmatprep.subr.mxu0 0.0
    %103 = vmatpush1.msra.mxu0 0.0
    %104 = vmatprep.subr.mxu0 0.0
    %105 = vmatpush1.msra.mxu0 0.0
    %106 = vmatprep.subr.mxu0 0.0
    %107 = vmatpush1.msra.mxu0 0.0
    %108 = vmatprep.subr.mxu0 0.0
    %109 = vmatpush1.msra.mxu0 0.0
    %110 = vmatprep.subr.mxu0 0.0
    %111 = vmatpush1.msra.mxu0 0.0
    %112 = vmatprep.subr.mxu0 0.0
    %113 = vmatpush1.msra.mxu0 0.0
    %114 = vmatprep.subr.mxu0 0.0
    %115 = vmatpush1.msra.mxu0 0.0
    %116 = vmatprep.subr.mxu0 0.0
    %117 = vmatpush1.msra.mxu0 0.0
    %118 = vmatprep.subr.mxu0 0.0
    %119 = vmatpush1.msra.mxu0 0.0
    %120 = vmatprep.subr.mxu0 0.0
    %121 = vmatpush1.msra.mxu0 0.0
    %122 = vmatprep.subr.mxu0 0.0
    %123 = vmatpush1.msra.mxu0 0.0
    %124 = vmatprep.subr.mxu0 0.0
    %125 = vmatpush1.msra.mxu0 0.0
    %126 = vmatprep.subr.mxu0 0.0
    %127 = vmatpush1.msra.mxu0 0.0
    %128 = vmatprep.subr.mxu0 0.0
    %129 = vmatpush1.msra.mxu0 0.0
    %130 = vmatprep.subr.mxu0 0.0
    %131 = vmatpush1.msra.mxu0 0.0
    %132 = vmatprep.subr.mxu0 0.0
    %133 = vmatpush1.msra.mxu0 0.0
    %134 = vmatprep.subr.mxu0 0.0
    %135 = vmatpush1.msra.mxu0 0.0
    %136 = vmatprep.subr.mxu0 0.0
    %137 = vmatpush1.msra.mxu0 0.0
    %138 = vmatprep.subr.mxu0 0.0
    %139 = vmatpush1.msra.mxu0 0.0
    %140 = vmatprep.subr.mxu0 0.0
    %141 = vmatpush1.msra.mxu0 0.0
    %142 = vmatprep.mubr.f32.mxu0 0.0
    %143 = vmatmul.mubr.f32.gmra.mrb[0].mxu0 %v55
    %v144 = vpop.f32.mrb[0].mxu0
    %v145 = vadd.f32 %v51, %v144
    %v146 = vpop.f32.mrb[0].mxu0
    %147 = vmatprep.mubr.f32.mxu0 0.0
    %148 = vmatmul.mubr.f32.gmra.mrb[0].mxu0 %v58
    %v149 = vpop.f32.mrb[0].mxu0
    %v150 = vadd.f32 %v51, %v149
    %v151 = vpop.f32.mrb[0].mxu0
    %152 = vmatprep.mubr.f32.mxu0 0.0
    %153 = vmatmul.mubr.f32.gmra.mrb[0].mxu0 %v61
    %v154 = vpop.f32.mrb[0].mxu0
    %v155 = vadd.f32 %v51, %v154
    %v156 = vpop.f32.mrb[0].mxu0
    %157 = vmatprep.mubr.f32.mxu0 0.0
    %158 = vmatmul.mubr.f32.gmra.mrb[0].mxu0 %v64
    %v159 = vpop.f32.mrb[0].mxu0
    %v160 = vadd.f32 %v51, %v159
    %v161 = vpop.f32.mrb[0].mxu0
    %162 = vmatprep.mubr.f32.mxu0 0.0
    %163 = vmatmul.mubr.f32.gmra.mrb[0].mxu0 %v67
    %v164 = vpop.f32.mrb[0].mxu0
    %v165 = vadd.f32 %v51, %v164
    %v166 = vpop.f32.mrb[0].mxu0
    %167 = vmatprep.mubr.f32.mxu0 0.0
    %168 = vmatmul.mubr.f32.gmra.mrb[0].mxu0 %v70
    %v169 = vpop.f32.mrb[0].mxu0
    %v170 = vadd.f32 %v51, %v169
    %v171 = vpop.f32.mrb[0].mxu0
    %172 = vmatprep.mubr.f32.mxu0 0.0
    %173 = vmatmul.mubr.f32.gmra.mrb[0].mxu0 %v73
    %v174 = vpop.f32.mrb[0].mxu0
    %v175 = vadd.f32 %v51, %v174
    %v176 = vpop.f32.mrb[0].mxu0
    %177 = vmatprep.mubr.f32.mxu0 0.0
    %178 = vmatmul.mubr.f32.gmra.mrb[0].mxu0 %v76
    %v179 = vpop.f32.mrb[0].mxu0
    %v180 = vadd.f32 %v51, %v179
    %v181 = vpop.f32.mrb[0].mxu0
    %182 = vdwg.mxu0
    %vm183 = vcmask 785408
    %184 = vst.msk [vmem:[#allocation2] sm:$0xff] %vm183, %v145
    %185 = vst.msk [vmem:[#allocation2 + $0x8] sm:$0xff] %vm183, %v150
    %186 = vst.msk [vmem:[#allocation2 + $0x10] sm:$0xff] %vm183, %v155
    %187 = vst.msk [vmem:[#allocation2 + $0x18] sm:$0xff] %vm183, %v160
    %188 = vst.msk [vmem:[#allocation2 + $0x20] sm:$0xff] %vm183, %v165
    %189 = vst.msk [vmem:[#allocation2 + $0x28] sm:$0xff] %vm183, %v170
    %190 = vst.msk [vmem:[#allocation2 + $0x30] sm:$0xff] %vm183, %v175
    %191 = vst.msk [vmem:[#allocation2 + $0x38] sm:$0xff] %vm183, %v180
    %v192 = vld [vmem:[%s2] sm:$0xff]
    %v193 = vld [vmem:[%s2 + $0x8] sm:$0xff]
    %v194 = vld [vmem:[%s2 + $0x10] sm:$0xff]
    %v195 = vld [vmem:[%s2 + $0x18] sm:$0xff]
    %v196 = vld [vmem:[%s4] sm:$0x1]
    %v197 = vld [vmem:[#allocation2] sm:$0xff]
    %vm198 = vcmask 261120
    %v200 = vsel %vm198, 0.0, 0
    %202 = vmatprep.subr.mxu0 0.0
    %203 = vmatpush1.msra.mxu0 %v192
    %204 = vmatprep.subr.mxu0 0.0
    %205 = vmatpush1.msra.mxu0 %v193
    %206 = vmatprep.subr.mxu0 0.0
    %207 = vmatpush1.msra.mxu0 %v194
    %208 = vmatprep.subr.mxu0 0.0
    %209 = vmatpush1.msra.mxu0 %v195
    %210 = vmatprep.subr.mxu0 0.0
    %211 = vmatpush1.msra.mxu0 0.0
    %212 = vmatprep.subr.mxu0 0.0
    %213 = vmatpush1.msra.mxu0 0.0
    %214 = vmatprep.subr.mxu0 0.0
    %215 = vmatpush1.msra.mxu0 0.0
    %216 = vmatprep.subr.mxu0 0.0
    %217 = vmatpush1.msra.mxu0 0.0
    %218 = vmatprep.subr.mxu0 0.0
    %219 = vmatpush1.msra.mxu0 0.0
    %220 = vmatprep.subr.mxu0 0.0
    %221 = vmatpush1.msra.mxu0 0.0
    %222 = vmatprep.subr.mxu0 0.0
    %223 = vmatpush1.msra.mxu0 0.0
    %224 = vmatprep.subr.mxu0 0.0
    %225 = vmatpush1.msra.mxu0 0.0
    %226 = vmatprep.subr.mxu0 0.0
    %227 = vmatpush1.msra.mxu0 0.0
    %228 = vmatprep.subr.mxu0 0.0
    %229 = vmatpush1.msra.mxu0 0.0
    %230 = vmatprep.subr.mxu0 0.0
    %231 = vmatpush1.msra.mxu0 0.0
    %232 = vmatprep.subr.mxu0 0.0
    %233 = vmatpush1.msra.mxu0 0.0
    %234 = vmatprep.subr.mxu0 0.0
    %235 = vmatpush1.msra.mxu0 0.0
    %236 = vmatprep.subr.mxu0 0.0
    %237 = vmatpush1.msra.mxu0 0.0
    %238 = vmatprep.subr.mxu0 0.0
    %239 = vmatpush1.msra.mxu0 0.0
    %240 = vmatprep.subr.mxu0 0.0
    %241 = vmatpush1.msra.mxu0 0.0
    %242 = vmatprep.subr.mxu0 0.0
    %243 = vmatpush1.msra.mxu0 0.0
    %244 = vmatprep.subr.mxu0 0.0
    %245 = vmatpush1.msra.mxu0 0.0
    %246 = vmatprep.subr.mxu0 0.0
    %247 = vmatpush1.msra.mxu0 0.0
    %248 = vmatprep.subr.mxu0 0.0
    %249 = vmatpush1.msra.mxu0 0.0
    %250 = vmatprep.subr.mxu0 0.0
    %251 = vmatpush1.msra.mxu0 0.0
    %252 = vmatprep.subr.mxu0 0.0
    %253 = vmatpush1.msra.mxu0 0.0
    %254 = vmatprep.subr.mxu0 0.0
    %255 = vmatpush1.msra.mxu0 0.0
    %256 = vmatprep.subr.mxu0 0.0
    %257 = vmatpush1.msra.mxu0 0.0
    %258 = vmatprep.subr.mxu0 0.0
    %259 = vmatpush1.msra.mxu0 0.0
    %260 = vmatprep.subr.mxu0 0.0
    %261 = vmatpush1.msra.mxu0 0.0
    %262 = vmatprep.subr.mxu0 0.0
    %263 = vmatpush1.msra.mxu0 0.0
    %264 = vmatprep.subr.mxu0 0.0
    %265 = vmatpush1.msra.mxu0 0.0
    %266 = vmatprep.mubr.f32.mxu0 0.0
    %267 = vmatmul.mubr.f32.gmra.mrb[0].mxu0 %v200
    %v268 = vpop.f32.mrb[0].mxu0
    %v269 = vadd.f32 0.0, %v268
    %v270 = vpop.f32.mrb[0].mxu0
    %271 = vdwg.mxu0
    %v272 = vadd.f32 %v197, %v269
    %v273 = vxor.u32 %v272, 2147483648
    %v274 = vmul.f32 %v273, 1.442695
    %v275 = vpow.pop %v274
    %v276 = vadd.f32 %v275, 1.0
    %v277 = vrcp.pop %v276
    %v278 = vmul.f32 1.0, %v277
    %v280 = vlaneseq
    %v281 = vshrl.u32 %v280, 7
    %v282 = vsub.s32 0, %v281
    %v283 = vrot.slane %v196, %v282
    %284 = vrot.lane.b32.xlu0 %v283, 64
    %v285 = vpop.permute.xlu0 %284
    %v287 = vadd.f32 %v269, %v285
    %289 = vrot.lane.b32.xlu0 %v287, 64
    %v290 = vpop.permute.xlu0 %289
    %v292 = vmul.f32 %v278, %v290
    %294 = vrot.lane.b32.xlu0 %v292, 64
    %v295 = vpop.permute.xlu0 %294
    %v297 = vadd.f32 %v197, %v295
    %v298 = vtanh.pop %v297
    %v299 = vsub.f32 0.0, %v298
    %301 = vrot.lane.b32.xlu0 %v299, 96
    %v302 = vpop.permute.xlu0 %301
    %v304 = vmul.f32 %v278, %v302
    %306 = vrot.lane.b32.xlu0 %v304, 32
    %v307 = vpop.permute.xlu0 %306
    %v309 = vadd.f32 %v298, %v307
    %s310 = scalar_lea.vmem [#allocation2], 8
    %v311 = vld [vmem:[%s310] sm:$0xff]
    %313 = vrot.lane.b32.xlu0 %v309, 64
    %v314 = vpop.permute.xlu0 %313
    %v315 = vsel %vm198, %v314, 0
    %317 = vmatprep.subr.mxu0 0.0
    %318 = vmatpush1.msra.mxu0 %v192
    %319 = vmatprep.subr.mxu0 0.0
    %320 = vmatpush1.msra.mxu0 %v193
    %321 = vmatprep.subr.mxu0 0.0
    %322 = vmatpush1.msra.mxu0 %v194
    %323 = vmatprep.subr.mxu0 0.0
    %324 = vmatpush1.msra.mxu0 %v195
    %325 = vmatprep.subr.mxu0 0.0
    %326 = vmatpush1.msra.mxu0 0.0
    %327 = vmatprep.subr.mxu0 0.0
    %328 = vmatpush1.msra.mxu0 0.0
    %329 = vmatprep.subr.mxu0 0.0
    %330 = vmatpush1.msra.mxu0 0.0
    %331 = vmatprep.subr.mxu0 0.0
    %332 = vmatpush1.msra.mxu0 0.0
    %333 = vmatprep.subr.mxu0 0.0
    %334 = vmatpush1.msra.mxu0 0.0
    %335 = vmatprep.subr.mxu0 0.0
    %336 = vmatpush1.msra.mxu0 0.0
    %337 = vmatprep.subr.mxu0 0.0
    %338 = vmatpush1.msra.mxu0 0.0
    %339 = vmatprep.subr.mxu0 0.0
    %340 = vmatpush1.msra.mxu0 0.0
    %341 = vmatprep.subr.mxu0 0.0
    %342 = vmatpush1.msra.mxu0 0.0
    %343 = vmatprep.subr.mxu0 0.0
    %344 = vmatpush1.msra.mxu0 0.0
    %345 = vmatprep.subr.mxu0 0.0
    %346 = vmatpush1.msra.mxu0 0.0
    %347 = vmatprep.subr.mxu0 0.0
    %348 = vmatpush1.msra.mxu0 0.0
    %349 = vmatprep.subr.mxu0 0.0
    %350 = vmatpush1.msra.mxu0 0.0
    %351 = vmatprep.subr.mxu0 0.0
    %352 = vmatpush1.msra.mxu0 0.0
    %353 = vmatprep.subr.mxu0 0.0
    %354 = vmatpush1.msra.mxu0 0.0
    %355 = vmatprep.subr.mxu0 0.0
    %356 = vmatpush1.msra.mxu0 0.0
    %357 = vmatprep.subr.mxu0 0.0
    %358 = vmatpush1.msra.mxu0 0.0
    %359 = vmatprep.subr.mxu0 0.0
    %360 = vmatpush1.msra.mxu0 0.0
    %361 = vmatprep.subr.mxu0 0.0
    %362 = vmatpush1.msra.mxu0 0.0
    %363 = vmatprep.subr.mxu0 0.0
    %364 = vmatpush1.msra.mxu0 0.0
    %365 = vmatprep.subr.mxu0 0.0
    %366 = vmatpush1.msra.mxu0 0.0
    %367 = vmatprep.subr.mxu0 0.0
    %368 = vmatpush1.msra.mxu0 0.0
    %369 = vmatprep.subr.mxu0 0.0
    %370 = vmatpush1.msra.mxu0 0.0
    %371 = vmatprep.subr.mxu0 0.0
    %372 = vmatpush1.msra.mxu0 0.0
    %373 = vmatprep.subr.mxu0 0.0
    %374 = vmatpush1.msra.mxu0 0.0
    %375 = vmatprep.subr.mxu0 0.0
    %376 = vmatpush1.msra.mxu0 0.0
    %377 = vmatprep.subr.mxu0 0.0
    %378 = vmatpush1.msra.mxu0 0.0
    %379 = vmatprep.subr.mxu0 0.0
    %380 = vmatpush1.msra.mxu0 0.0
    %381 = vmatprep.mubr.f32.mxu0 0.0
    %382 = vmatmul.mubr.f32.gmra.mrb[0].mxu0 %v315
    %v383 = vpop.f32.mrb[0].mxu0
    %v384 = vadd.f32 0.0, %v383
    %v385 = vpop.f32.mrb[0].mxu0
    %386 = vdwg.mxu0
    %v387 = vadd.f32 %v311, %v384
    %v388 = vxor.u32 %v387, 2147483648
    %v389 = vmul.f32 %v388, 1.442695
    %v390 = vpow.pop %v389
    %v391 = vadd.f32 %v390, 1.0
    %v392 = vrcp.pop %v391
    %v393 = vmul.f32 1.0, %v392
    %v394 = vadd.f32 %v384, %v285
    %396 = vrot.lane.b32.xlu0 %v394, 64
    %v397 = vpop.permute.xlu0 %396
    %v399 = vmul.f32 %v393, %v397
    %401 = vrot.lane.b32.xlu0 %v399, 64
    %v402 = vpop.permute.xlu0 %401
    %v404 = vadd.f32 %v311, %v402
    %v405 = vtanh.pop %v404
    %v406 = vsub.f32 %v309, %v405
    %408 = vrot.lane.b32.xlu0 %v406, 96
    %v409 = vpop.permute.xlu0 %408
    %v411 = vmul.f32 %v393, %v409
    %413 = vrot.lane.b32.xlu0 %v411, 32
    %v414 = vpop.permute.xlu0 %413
    %v416 = vadd.f32 %v405, %v414
    %s417 = scalar_lea.vmem [#allocation2], 16
    %v418 = vld [vmem:[%s417] sm:$0xff]
    %420 = vrot.lane.b32.xlu0 %v416, 64
    %v421 = vpop.permute.xlu0 %420
    %v422 = vsel %vm198, %v421, 0
    %424 = vmatprep.subr.mxu0 0.0
    %425 = vmatpush1.msra.mxu0 %v192
    %426 = vmatprep.subr.mxu0 0.0
    %427 = vmatpush1.msra.mxu0 %v193
    %428 = vmatprep.subr.mxu0 0.0
    %429 = vmatpush1.msra.mxu0 %v194
    %430 = vmatprep.subr.mxu0 0.0
    %431 = vmatpush1.msra.mxu0 %v195
    %432 = vmatprep.subr.mxu0 0.0
    %433 = vmatpush1.msra.mxu0 0.0
    %434 = vmatprep.subr.mxu0 0.0
    %435 = vmatpush1.msra.mxu0 0.0
    %436 = vmatprep.subr.mxu0 0.0
    %437 = vmatpush1.msra.mxu0 0.0
    %438 = vmatprep.subr.mxu0 0.0
    %439 = vmatpush1.msra.mxu0 0.0
    %440 = vmatprep.subr.mxu0 0.0
    %441 = vmatpush1.msra.mxu0 0.0
    %442 = vmatprep.subr.mxu0 0.0
    %443 = vmatpush1.msra.mxu0 0.0
    %444 = vmatprep.subr.mxu0 0.0
    %445 = vmatpush1.msra.mxu0 0.0
    %446 = vmatprep.subr.mxu0 0.0
    %447 = vmatpush1.msra.mxu0 0.0
    %448 = vmatprep.subr.mxu0 0.0
    %449 = vmatpush1.msra.mxu0 0.0
    %450 = vmatprep.subr.mxu0 0.0
    %451 = vmatpush1.msra.mxu0 0.0
    %452 = vmatprep.subr.mxu0 0.0
    %453 = vmatpush1.msra.mxu0 0.0
    %454 = vmatprep.subr.mxu0 0.0
    %455 = vmatpush1.msra.mxu0 0.0
    %456 = vmatprep.subr.mxu0 0.0
    %457 = vmatpush1.msra.mxu0 0.0
    %458 = vmatprep.subr.mxu0 0.0
    %459 = vmatpush1.msra.mxu0 0.0
    %460 = vmatprep.subr.mxu0 0.0
    %461 = vmatpush1.msra.mxu0 0.0
    %462 = vmatprep.subr.mxu0 0.0
    %463 = vmatpush1.msra.mxu0 0.0
    %464 = vmatprep.subr.mxu0 0.0
    %465 = vmatpush1.msra.mxu0 0.0
    %466 = vmatprep.subr.mxu0 0.0
    %467 = vmatpush1.msra.mxu0 0.0
    %468 = vmatprep.subr.mxu0 0.0
    %469 = vmatpush1.msra.mxu0 0.0
    %470 = vmatprep.subr.mxu0 0.0
    %471 = vmatpush1.msra.mxu0 0.0
    %472 = vmatprep.subr.mxu0 0.0
    %473 = vmatpush1.msra.mxu0 0.0
    %474 = vmatprep.subr.mxu0 0.0
    %475 = vmatpush1.msra.mxu0 0.0
    %476 = vmatprep.subr.mxu0 0.0
    %477 = vmatpush1.msra.mxu0 0.0
    %478 = vmatprep.subr.mxu0 0.0
    %479 = vmatpush1.msra.mxu0 0.0
    %480 = vmatprep.subr.mxu0 0.0
    %481 = vmatpush1.msra.mxu0 0.0
    %482 = vmatprep.subr.mxu0 0.0
    %483 = vmatpush1.msra.mxu0 0.0
    %484 = vmatprep.subr.mxu0 0.0
    %485 = vmatpush1.msra.mxu0 0.0
    %486 = vmatprep.subr.mxu0 0.0
    %487 = vmatpush1.msra.mxu0 0.0
    %488 = vmatprep.mubr.f32.mxu0 0.0
    %489 = vmatmul.mubr.f32.gmra.mrb[0].mxu0 %v422
    %v490 = vpop.f32.mrb[0].mxu0
    %v491 = vadd.f32 0.0, %v490
    %v492 = vpop.f32.mrb[0].mxu0
    %493 = vdwg.mxu0
    %v494 = vadd.f32 %v418, %v491
    %v495 = vxor.u32 %v494, 2147483648
    %v496 = vmul.f32 %v495, 1.442695
    %v497 = vpow.pop %v496
    %v498 = vadd.f32 %v497, 1.0
    %v499 = vrcp.pop %v498
    %v500 = vmul.f32 1.0, %v499
    %v501 = vadd.f32 %v491, %v285
    %503 = vrot.lane.b32.xlu0 %v501, 64
    %v504 = vpop.permute.xlu0 %503
    %v506 = vmul.f32 %v500, %v504
    %508 = vrot.lane.b32.xlu0 %v506, 64
    %v509 = vpop.permute.xlu0 %508
    %v511 = vadd.f32 %v418, %v509
    %v512 = vtanh.pop %v511
    %v513 = vsub.f32 %v416, %v512
    %515 = vrot.lane.b32.xlu0 %v513, 96
    %v516 = vpop.permute.xlu0 %515
    %v518 = vmul.f32 %v500, %v516
    %520 = vrot.lane.b32.xlu0 %v518, 32
    %v521 = vpop.permute.xlu0 %520
    %v523 = vadd.f32 %v512, %v521
    %s524 = scalar_lea.vmem [#allocation2], 24
    %v525 = vld [vmem:[%s524] sm:$0xff]
    %527 = vrot.lane.b32.xlu0 %v523, 64
    %v528 = vpop.permute.xlu0 %527
    %v529 = vsel %vm198, %v528, 0
    %531 = vmatprep.subr.mxu0 0.0
    %532 = vmatpush1.msra.mxu0 %v192
    %533 = vmatprep.subr.mxu0 0.0
    %534 = vmatpush1.msra.mxu0 %v193
    %535 = vmatprep.subr.mxu0 0.0
    %536 = vmatpush1.msra.mxu0 %v194
    %537 = vmatprep.subr.mxu0 0.0
    %538 = vmatpush1.msra.mxu0 %v195
    %539 = vmatprep.subr.mxu0 0.0
    %540 = vmatpush1.msra.mxu0 0.0
    %541 = vmatprep.subr.mxu0 0.0
    %542 = vmatpush1.msra.mxu0 0.0
    %543 = vmatprep.subr.mxu0 0.0
    %544 = vmatpush1.msra.mxu0 0.0
    %545 = vmatprep.subr.mxu0 0.0
    %546 = vmatpush1.msra.mxu0 0.0
    %547 = vmatprep.subr.mxu0 0.0
    %548 = vmatpush1.msra.mxu0 0.0
    %549 = vmatprep.subr.mxu0 0.0
    %550 = vmatpush1.msra.mxu0 0.0
    %551 = vmatprep.subr.mxu0 0.0
    %552 = vmatpush1.msra.mxu0 0.0
    %553 = vmatprep.subr.mxu0 0.0
    %554 = vmatpush1.msra.mxu0 0.0
    %555 = vmatprep.subr.mxu0 0.0
    %556 = vmatpush1.msra.mxu0 0.0
    %557 = vmatprep.subr.mxu0 0.0
    %558 = vmatpush1.msra.mxu0 0.0
    %559 = vmatprep.subr.mxu0 0.0
    %560 = vmatpush1.msra.mxu0 0.0
    %561 = vmatprep.subr.mxu0 0.0
    %562 = vmatpush1.msra.mxu0 0.0
    %563 = vmatprep.subr.mxu0 0.0
    %564 = vmatpush1.msra.mxu0 0.0
    %565 = vmatprep.subr.mxu0 0.0
    %566 = vmatpush1.msra.mxu0 0.0
    %567 = vmatprep.subr.mxu0 0.0
    %568 = vmatpush1.msra.mxu0 0.0
    %569 = vmatprep.subr.mxu0 0.0
    %570 = vmatpush1.msra.mxu0 0.0
    %571 = vmatprep.subr.mxu0 0.0
    %572 = vmatpush1.msra.mxu0 0.0
    %573 = vmatprep.subr.mxu0 0.0
    %574 = vmatpush1.msra.mxu0 0.0
    %575 = vmatprep.subr.mxu0 0.0
    %576 = vmatpush1.msra.mxu0 0.0
    %577 = vmatprep.subr.mxu0 0.0
    %578 = vmatpush1.msra.mxu0 0.0
    %579 = vmatprep.subr.mxu0 0.0
    %580 = vmatpush1.msra.mxu0 0.0
    %581 = vmatprep.subr.mxu0 0.0
    %582 = vmatpush1.msra.mxu0 0.0
    %583 = vmatprep.subr.mxu0 0.0
    %584 = vmatpush1.msra.mxu0 0.0
    %585 = vmatprep.subr.mxu0 0.0
    %586 = vmatpush1.msra.mxu0 0.0
    %587 = vmatprep.subr.mxu0 0.0
    %588 = vmatpush1.msra.mxu0 0.0
    %589 = vmatprep.subr.mxu0 0.0
    %590 = vmatpush1.msra.mxu0 0.0
    %591 = vmatprep.subr.mxu0 0.0
    %592 = vmatpush1.msra.mxu0 0.0
    %593 = vmatprep.subr.mxu0 0.0
    %594 = vmatpush1.msra.mxu0 0.0
    %595 = vmatprep.mubr.f32.mxu0 0.0
    %596 = vmatmul.mubr.f32.gmra.mrb[0].mxu0 %v529
    %v597 = vpop.f32.mrb[0].mxu0
    %v598 = vadd.f32 0.0, %v597
    %v599 = vpop.f32.mrb[0].mxu0
    %600 = vdwg.mxu0
    %v601 = vadd.f32 %v525, %v598
    %v602 = vxor.u32 %v601, 2147483648
    %v603 = vmul.f32 %v602, 1.442695
    %v604 = vpow.pop %v603
    %v605 = vadd.f32 %v604, 1.0
    %v606 = vrcp.pop %v605
    %v607 = vmul.f32 1.0, %v606
    %v608 = vadd.f32 %v598, %v285
    %610 = vrot.lane.b32.xlu0 %v608, 64
    %v611 = vpop.permute.xlu0 %610
    %v613 = vmul.f32 %v607, %v611
    %615 = vrot.lane.b32.xlu0 %v613, 64
    %v616 = vpop.permute.xlu0 %615
    %v618 = vadd.f32 %v525, %v616
    %v619 = vtanh.pop %v618
    %v620 = vsub.f32 %v523, %v619
    %622 = vrot.lane.b32.xlu0 %v620, 96
    %v623 = vpop.permute.xlu0 %622
    %v625 = vmul.f32 %v607, %v623
    %627 = vrot.lane.b32.xlu0 %v625, 32
    %v628 = vpop.permute.xlu0 %627
    %v630 = vadd.f32 %v619, %v628
    %s631 = scalar_lea.vmem [#allocation2], 32
    %v632 = vld [vmem:[%s631] sm:$0xff]
    %634 = vrot.lane.b32.xlu0 %v630, 64
    %v635 = vpop.permute.xlu0 %634
    %v636 = vsel %vm198, %v635, 0
    %638 = vmatprep.subr.mxu0 0.0
    %639 = vmatpush1.msra.mxu0 %v192
    %640 = vmatprep.subr.mxu0 0.0
    %641 = vmatpush1.msra.mxu0 %v193
    %642 = vmatprep.subr.mxu0 0.0
    %643 = vmatpush1.msra.mxu0 %v194
    %644 = vmatprep.subr.mxu0 0.0
    %645 = vmatpush1.msra.mxu0 %v195
    %646 = vmatprep.subr.mxu0 0.0
    %647 = vmatpush1.msra.mxu0 0.0
    %648 = vmatprep.subr.mxu0 0.0
    %649 = vmatpush1.msra.mxu0 0.0
    %650 = vmatprep.subr.mxu0 0.0
    %651 = vmatpush1.msra.mxu0 0.0
    %652 = vmatprep.subr.mxu0 0.0
    %653 = vmatpush1.msra.mxu0 0.0
    %654 = vmatprep.subr.mxu0 0.0
    %655 = vmatpush1.msra.mxu0 0.0
    %656 = vmatprep.subr.mxu0 0.0
    %657 = vmatpush1.msra.mxu0 0.0
    %658 = vmatprep.subr.mxu0 0.0
    %659 = vmatpush1.msra.mxu0 0.0
    %660 = vmatprep.subr.mxu0 0.0
    %661 = vmatpush1.msra.mxu0 0.0
    %662 = vmatprep.subr.mxu0 0.0
    %663 = vmatpush1.msra.mxu0 0.0
    %664 = vmatprep.subr.mxu0 0.0
    %665 = vmatpush1.msra.mxu0 0.0
    %666 = vmatprep.subr.mxu0 0.0
    %667 = vmatpush1.msra.mxu0 0.0
    %668 = vmatprep.subr.mxu0 0.0
    %669 = vmatpush1.msra.mxu0 0.0
    %670 = vmatprep.subr.mxu0 0.0
    %671 = vmatpush1.msra.mxu0 0.0
    %672 = vmatprep.subr.mxu0 0.0
    %673 = vmatpush1.msra.mxu0 0.0
    %674 = vmatprep.subr.mxu0 0.0
    %675 = vmatpush1.msra.mxu0 0.0
    %676 = vmatprep.subr.mxu0 0.0
    %677 = vmatpush1.msra.mxu0 0.0
    %678 = vmatprep.subr.mxu0 0.0
    %679 = vmatpush1.msra.mxu0 0.0
    %680 = vmatprep.subr.mxu0 0.0
    %681 = vmatpush1.msra.mxu0 0.0
    %682 = vmatprep.subr.mxu0 0.0
    %683 = vmatpush1.msra.mxu0 0.0
    %684 = vmatprep.subr.mxu0 0.0
    %685 = vmatpush1.msra.mxu0 0.0
    %686 = vmatprep.subr.mxu0 0.0
    %687 = vmatpush1.msra.mxu0 0.0
    %688 = vmatprep.subr.mxu0 0.0
    %689 = vmatpush1.msra.mxu0 0.0
    %690 = vmatprep.subr.mxu0 0.0
    %691 = vmatpush1.msra.mxu0 0.0
    %692 = vmatprep.subr.mxu0 0.0
    %693 = vmatpush1.msra.mxu0 0.0
    %694 = vmatprep.subr.mxu0 0.0
    %695 = vmatpush1.msra.mxu0 0.0
    %696 = vmatprep.subr.mxu0 0.0
    %697 = vmatpush1.msra.mxu0 0.0
    %698 = vmatprep.subr.mxu0 0.0
    %699 = vmatpush1.msra.mxu0 0.0
    %700 = vmatprep.subr.mxu0 0.0
    %701 = vmatpush1.msra.mxu0 0.0
    %702 = vmatprep.mubr.f32.mxu0 0.0
    %703 = vmatmul.mubr.f32.gmra.mrb[0].mxu0 %v636
    %v704 = vpop.f32.mrb[0].mxu0
    %v705 = vadd.f32 0.0, %v704
    %v706 = vpop.f32.mrb[0].mxu0
    %707 = vdwg.mxu0
    %v708 = vadd.f32 %v632, %v705
    %v709 = vxor.u32 %v708, 2147483648
    %v710 = vmul.f32 %v709, 1.442695
    %v711 = vpow.pop %v710
    %v712 = vadd.f32 %v711, 1.0
    %v713 = vrcp.pop %v712
    %v714 = vmul.f32 1.0, %v713
    %v715 = vadd.f32 %v705, %v285
    %717 = vrot.lane.b32.xlu0 %v715, 64
    %v718 = vpop.permute.xlu0 %717
    %v720 = vmul.f32 %v714, %v718
    %722 = vrot.lane.b32.xlu0 %v720, 64
    %v723 = vpop.permute.xlu0 %722
    %v725 = vadd.f32 %v632, %v723
    %v726 = vtanh.pop %v725
    %v727 = vsub.f32 %v630, %v726
    %729 = vrot.lane.b32.xlu0 %v727, 96
    %v730 = vpop.permute.xlu0 %729
    %v732 = vmul.f32 %v714, %v730
    %734 = vrot.lane.b32.xlu0 %v732, 32
    %v735 = vpop.permute.xlu0 %734
    %v737 = vadd.f32 %v726, %v735
    %s738 = scalar_lea.vmem [#allocation2], 40
    %v739 = vld [vmem:[%s738] sm:$0xff]
    %741 = vrot.lane.b32.xlu0 %v737, 64
    %v742 = vpop.permute.xlu0 %741
    %v743 = vsel %vm198, %v742, 0
    %745 = vmatprep.subr.mxu0 0.0
    %746 = vmatpush1.msra.mxu0 %v192
    %747 = vmatprep.subr.mxu0 0.0
    %748 = vmatpush1.msra.mxu0 %v193
    %749 = vmatprep.subr.mxu0 0.0
    %750 = vmatpush1.msra.mxu0 %v194
    %751 = vmatprep.subr.mxu0 0.0
    %752 = vmatpush1.msra.mxu0 %v195
    %753 = vmatprep.subr.mxu0 0.0
    %754 = vmatpush1.msra.mxu0 0.0
    %755 = vmatprep.subr.mxu0 0.0
    %756 = vmatpush1.msra.mxu0 0.0
    %757 = vmatprep.subr.mxu0 0.0
    %758 = vmatpush1.msra.mxu0 0.0
    %759 = vmatprep.subr.mxu0 0.0
    %760 = vmatpush1.msra.mxu0 0.0
    %761 = vmatprep.subr.mxu0 0.0
    %762 = vmatpush1.msra.mxu0 0.0
    %763 = vmatprep.subr.mxu0 0.0
    %764 = vmatpush1.msra.mxu0 0.0
    %765 = vmatprep.subr.mxu0 0.0
    %766 = vmatpush1.msra.mxu0 0.0
    %767 = vmatprep.subr.mxu0 0.0
    %768 = vmatpush1.msra.mxu0 0.0
    %769 = vmatprep.subr.mxu0 0.0
    %770 = vmatpush1.msra.mxu0 0.0
    %771 = vmatprep.subr.mxu0 0.0
    %772 = vmatpush1.msra.mxu0 0.0
    %773 = vmatprep.subr.mxu0 0.0
    %774 = vmatpush1.msra.mxu0 0.0
    %775 = vmatprep.subr.mxu0 0.0
    %776 = vmatpush1.msra.mxu0 0.0
    %777 = vmatprep.subr.mxu0 0.0
    %778 = vmatpush1.msra.mxu0 0.0
    %779 = vmatprep.subr.mxu0 0.0
    %780 = vmatpush1.msra.mxu0 0.0
    %781 = vmatprep.subr.mxu0 0.0
    %782 = vmatpush1.msra.mxu0 0.0
    %783 = vmatprep.subr.mxu0 0.0
    %784 = vmatpush1.msra.mxu0 0.0
    %785 = vmatprep.subr.mxu0 0.0
    %786 = vmatpush1.msra.mxu0 0.0
    %787 = vmatprep.subr.mxu0 0.0
    %788 = vmatpush1.msra.mxu0 0.0
    %789 = vmatprep.subr.mxu0 0.0
    %790 = vmatpush1.msra.mxu0 0.0
    %791 = vmatprep.subr.mxu0 0.0
    %792 = vmatpush1.msra.mxu0 0.0
    %793 = vmatprep.subr.mxu0 0.0
    %794 = vmatpush1.msra.mxu0 0.0
    %795 = vmatprep.subr.mxu0 0.0
    %796 = vmatpush1.msra.mxu0 0.0
    %797 = vmatprep.subr.mxu0 0.0
    %798 = vmatpush1.msra.mxu0 0.0
    %799 = vmatprep.subr.mxu0 0.0
    %800 = vmatpush1.msra.mxu0 0.0
    %801 = vmatprep.subr.mxu0 0.0
    %802 = vmatpush1.msra.mxu0 0.0
    %803 = vmatprep.subr.mxu0 0.0
    %804 = vmatpush1.msra.mxu0 0.0
    %805 = vmatprep.subr.mxu0 0.0
    %806 = vmatpush1.msra.mxu0 0.0
    %807 = vmatprep.subr.mxu0 0.0
    %808 = vmatpush1.msra.mxu0 0.0
    %809 = vmatprep.mubr.f32.mxu0 0.0
    %810 = vmatmul.mubr.f32.gmra.mrb[0].mxu0 %v743
    %v811 = vpop.f32.mrb[0].mxu0
    %v812 = vadd.f32 0.0, %v811
    %v813 = vpop.f32.mrb[0].mxu0
    %814 = vdwg.mxu0
    %v815 = vadd.f32 %v739, %v812
    %v816 = vxor.u32 %v815, 2147483648
    %v817 = vmul.f32 %v816, 1.442695
    %v818 = vpow.pop %v817
    %v819 = vadd.f32 %v818, 1.0
    %v820 = vrcp.pop %v819
    %v821 = vmul.f32 1.0, %v820
    %v822 = vadd.f32 %v812, %v285
    %824 = vrot.lane.b32.xlu0 %v822, 64
    %v825 = vpop.permute.xlu0 %824
    %v827 = vmul.f32 %v821, %v825
    %829 = vrot.lane.b32.xlu0 %v827, 64
    %v830 = vpop.permute.xlu0 %829
    %v832 = vadd.f32 %v739, %v830
    %v833 = vtanh.pop %v832
    %v834 = vsub.f32 %v737, %v833
    %836 = vrot.lane.b32.xlu0 %v834, 96
    %v837 = vpop.permute.xlu0 %836
    %v839 = vmul.f32 %v821, %v837
    %841 = vrot.lane.b32.xlu0 %v839, 32
    %v842 = vpop.permute.xlu0 %841
    %v844 = vadd.f32 %v833, %v842
    %s845 = scalar_lea.vmem [#allocation2], 48
    %v846 = vld [vmem:[%s845] sm:$0xff]
    %848 = vrot.lane.b32.xlu0 %v844, 64
    %v849 = vpop.permute.xlu0 %848
    %v850 = vsel %vm198, %v849, 0
    %852 = vmatprep.subr.mxu0 0.0
    %853 = vmatpush1.msra.mxu0 %v192
    %854 = vmatprep.subr.mxu0 0.0
    %855 = vmatpush1.msra.mxu0 %v193
    %856 = vmatprep.subr.mxu0 0.0
    %857 = vmatpush1.msra.mxu0 %v194
    %858 = vmatprep.subr.mxu0 0.0
    %859 = vmatpush1.msra.mxu0 %v195
    %860 = vmatprep.subr.mxu0 0.0
    %861 = vmatpush1.msra.mxu0 0.0
    %862 = vmatprep.subr.mxu0 0.0
    %863 = vmatpush1.msra.mxu0 0.0
    %864 = vmatprep.subr.mxu0 0.0
    %865 = vmatpush1.msra.mxu0 0.0
    %866 = vmatprep.subr.mxu0 0.0
    %867 = vmatpush1.msra.mxu0 0.0
    %868 = vmatprep.subr.mxu0 0.0
    %869 = vmatpush1.msra.mxu0 0.0
    %870 = vmatprep.subr.mxu0 0.0
    %871 = vmatpush1.msra.mxu0 0.0
    %872 = vmatprep.subr.mxu0 0.0
    %873 = vmatpush1.msra.mxu0 0.0
    %874 = vmatprep.subr.mxu0 0.0
    %875 = vmatpush1.msra.mxu0 0.0
    %876 = vmatprep.subr.mxu0 0.0
    %877 = vmatpush1.msra.mxu0 0.0
    %878 = vmatprep.subr.mxu0 0.0
    %879 = vmatpush1.msra.mxu0 0.0
    %880 = vmatprep.subr.mxu0 0.0
    %881 = vmatpush1.msra.mxu0 0.0
    %882 = vmatprep.subr.mxu0 0.0
    %883 = vmatpush1.msra.mxu0 0.0
    %884 = vmatprep.subr.mxu0 0.0
    %885 = vmatpush1.msra.mxu0 0.0
    %886 = vmatprep.subr.mxu0 0.0
    %887 = vmatpush1.msra.mxu0 0.0
    %888 = vmatprep.subr.mxu0 0.0
    %889 = vmatpush1.msra.mxu0 0.0
    %890 = vmatprep.subr.mxu0 0.0
    %891 = vmatpush1.msra.mxu0 0.0
    %892 = vmatprep.subr.mxu0 0.0
    %893 = vmatpush1.msra.mxu0 0.0
    %894 = vmatprep.subr.mxu0 0.0
    %895 = vmatpush1.msra.mxu0 0.0
    %896 = vmatprep.subr.mxu0 0.0
    %897 = vmatpush1.msra.mxu0 0.0
    %898 = vmatprep.subr.mxu0 0.0
    %899 = vmatpush1.msra.mxu0 0.0
    %900 = vmatprep.subr.mxu0 0.0
    %901 = vmatpush1.msra.mxu0 0.0
    %902 = vmatprep.subr.mxu0 0.0
    %903 = vmatpush1.msra.mxu0 0.0
    %904 = vmatprep.subr.mxu0 0.0
    %905 = vmatpush1.msra.mxu0 0.0
    %906 = vmatprep.subr.mxu0 0.0
    %907 = vmatpush1.msra.mxu0 0.0
    %908 = vmatprep.subr.mxu0 0.0
    %909 = vmatpush1.msra.mxu0 0.0
    %910 = vmatprep.subr.mxu0 0.0
    %911 = vmatpush1.msra.mxu0 0.0
    %912 = vmatprep.subr.mxu0 0.0
    %913 = vmatpush1.msra.mxu0 0.0
    %914 = vmatprep.subr.mxu0 0.0
    %915 = vmatpush1.msra.mxu0 0.0
    %916 = vmatprep.mubr.f32.mxu0 0.0
    %917 = vmatmul.mubr.f32.gmra.mrb[0].mxu0 %v850
    %v918 = vpop.f32.mrb[0].mxu0
    %v919 = vadd.f32 0.0, %v918
    %v920 = vpop.f32.mrb[0].mxu0
    %921 = vdwg.mxu0
    %v922 = vadd.f32 %v846, %v919
    %v923 = vxor.u32 %v922, 2147483648
    %v924 = vmul.f32 %v923, 1.442695
    %v925 = vpow.pop %v924
    %v926 = vadd.f32 %v925, 1.0
    %v927 = vrcp.pop %v926
    %v928 = vmul.f32 1.0, %v927
    %v929 = vadd.f32 %v919, %v285
    %931 = vrot.lane.b32.xlu0 %v929, 64
    %v932 = vpop.permute.xlu0 %931
    %v934 = vmul.f32 %v928, %v932
    %936 = vrot.lane.b32.xlu0 %v934, 64
    %v937 = vpop.permute.xlu0 %936
    %v939 = vadd.f32 %v846, %v937
    %v940 = vtanh.pop %v939
    %v941 = vsub.f32 %v844, %v940
    %943 = vrot.lane.b32.xlu0 %v941, 96
    %v944 = vpop.permute.xlu0 %943
    %v946 = vmul.f32 %v928, %v944
    %948 = vrot.lane.b32.xlu0 %v946, 32
    %v949 = vpop.permute.xlu0 %948
    %v951 = vadd.f32 %v940, %v949
    %s952 = scalar_lea.vmem [#allocation2], 56
    %v953 = vld [vmem:[%s952] sm:$0xff]
    %955 = vrot.lane.b32.xlu0 %v951, 64
    %v956 = vpop.permute.xlu0 %955
    %v957 = vsel %vm198, %v956, 0
    %959 = vmatprep.subr.mxu0 0.0
    %960 = vmatpush1.msra.mxu0 %v192
    %961 = vmatprep.subr.mxu0 0.0
    %962 = vmatpush1.msra.mxu0 %v193
    %963 = vmatprep.subr.mxu0 0.0
    %964 = vmatpush1.msra.mxu0 %v194
    %965 = vmatprep.subr.mxu0 0.0
    %966 = vmatpush1.msra.mxu0 %v195
    %967 = vmatprep.subr.mxu0 0.0
    %968 = vmatpush1.msra.mxu0 0.0
    %969 = vmatprep.subr.mxu0 0.0
    %970 = vmatpush1.msra.mxu0 0.0
    %971 = vmatprep.subr.mxu0 0.0
    %972 = vmatpush1.msra.mxu0 0.0
    %973 = vmatprep.subr.mxu0 0.0
    %974 = vmatpush1.msra.mxu0 0.0
    %975 = vmatprep.subr.mxu0 0.0
    %976 = vmatpush1.msra.mxu0 0.0
    %977 = vmatprep.subr.mxu0 0.0
    %978 = vmatpush1.msra.mxu0 0.0
    %979 = vmatprep.subr.mxu0 0.0
    %980 = vmatpush1.msra.mxu0 0.0
    %981 = vmatprep.subr.mxu0 0.0
    %982 = vmatpush1.msra.mxu0 0.0
    %983 = vmatprep.subr.mxu0 0.0
    %984 = vmatpush1.msra.mxu0 0.0
    %985 = vmatprep.subr.mxu0 0.0
    %986 = vmatpush1.msra.mxu0 0.0
    %987 = vmatprep.subr.mxu0 0.0
    %988 = vmatpush1.msra.mxu0 0.0
    %989 = vmatprep.subr.mxu0 0.0
    %990 = vmatpush1.msra.mxu0 0.0
    %991 = vmatprep.subr.mxu0 0.0
    %992 = vmatpush1.msra.mxu0 0.0
    %993 = vmatprep.subr.mxu0 0.0
    %994 = vmatpush1.msra.mxu0 0.0
    %995 = vmatprep.subr.mxu0 0.0
    %996 = vmatpush1.msra.mxu0 0.0
    %997 = vmatprep.subr.mxu0 0.0
    %998 = vmatpush1.msra.mxu0 0.0
    %999 = vmatprep.subr.mxu0 0.0
    %1000 = vmatpush1.msra.mxu0 0.0
    %1001 = vmatprep.subr.mxu0 0.0
    %1002 = vmatpush1.msra.mxu0 0.0
    %1003 = vmatprep.subr.mxu0 0.0
    %1004 = vmatpush1.msra.mxu0 0.0
    %1005 = vmatprep.subr.mxu0 0.0
    %1006 = vmatpush1.msra.mxu0 0.0
    %1007 = vmatprep.subr.mxu0 0.0
    %1008 = vmatpush1.msra.mxu0 0.0
    %1009 = vmatprep.subr.mxu0 0.0
    %1010 = vmatpush1.msra.mxu0 0.0
    %1011 = vmatprep.subr.mxu0 0.0
    %1012 = vmatpush1.msra.mxu0 0.0
    %1013 = vmatprep.subr.mxu0 0.0
    %1014 = vmatpush1.msra.mxu0 0.0
    %1015 = vmatprep.subr.mxu0 0.0
    %1016 = vmatpush1.msra.mxu0 0.0
    %1017 = vmatprep.subr.mxu0 0.0
    %1018 = vmatpush1.msra.mxu0 0.0
    %1019 = vmatprep.subr.mxu0 0.0
    %1020 = vmatpush1.msra.mxu0 0.0
    %1021 = vmatprep.subr.mxu0 0.0
    %1022 = vmatpush1.msra.mxu0 0.0
    %1023 = vmatprep.mubr.f32.mxu0 0.0
    %1024 = vmatmul.mubr.f32.gmra.mrb[0].mxu0 %v957
    %v1025 = vpop.f32.mrb[0].mxu0
    %v1026 = vadd.f32 0.0, %v1025
    %v1027 = vpop.f32.mrb[0].mxu0
    %1028 = vdwg.mxu0
    %v1029 = vadd.f32 %v953, %v1026
    %v1030 = vxor.u32 %v1029, 2147483648
    %v1031 = vmul.f32 %v1030, 1.442695
    %v1032 = vpow.pop %v1031
    %v1033 = vadd.f32 %v1032, 1.0
    %v1034 = vrcp.pop %v1033
    %v1035 = vmul.f32 1.0, %v1034
    %v1036 = vadd.f32 %v1026, %v285
    %1038 = vrot.lane.b32.xlu0 %v1036, 64
    %v1039 = vpop.permute.xlu0 %1038
    %v1041 = vmul.f32 %v1035, %v1039
    %1043 = vrot.lane.b32.xlu0 %v1041, 64
    %v1044 = vpop.permute.xlu0 %1043
    %v1046 = vadd.f32 %v953, %v1044
    %v1047 = vtanh.pop %v1046
    %v1048 = vsub.f32 %v951, %v1047
    %1050 = vrot.lane.b32.xlu0 %v1048, 96
    %v1051 = vpop.permute.xlu0 %1050
    %v1053 = vmul.f32 %v1035, %v1051
    %1055 = vrot.lane.b32.xlu0 %v1053, 32
    %v1056 = vpop.permute.xlu0 %1055
    %v1058 = vadd.f32 %v1047, %v1056
    %v1059 = vld [vmem:[%s5] sm:$0xff]
    %v1060 = vld [vmem:[%s5 + $0x8] sm:$0xff]
    %v1061 = vld [vmem:[%s5 + $0x10] sm:$0xff]
    %v1062 = vld [vmem:[%s5 + $0x18] sm:$0xff]
    %v1063 = vld [vmem:[%s6] sm:$0x1]
    %v1065 = vlaneseq
    %v1066 = vshrl.u32 %v1065, 7
    %v1067 = vsub.s32 0, %v1066
    %v1068 = vrot.slane %v1063, %v1067
    %1071 = vrot.lane.b32.xlu0 %v1058, 64
    %v1072 = vpop.permute.xlu0 %1071
    %v1073 = vsel %vm198, %v1072, 0
    %1075 = vmatprep.subr.mxu0 0.0
    %1076 = vmatpush1.msra.mxu0 %v1059
    %1077 = vmatprep.subr.mxu0 0.0
    %1078 = vmatpush1.msra.mxu0 %v1060
    %1079 = vmatprep.subr.mxu0 0.0
    %1080 = vmatpush1.msra.mxu0 %v1061
    %1081 = vmatprep.subr.mxu0 0.0
    %1082 = vmatpush1.msra.mxu0 %v1062
    %1083 = vmatprep.subr.mxu0 0.0
    %1084 = vmatpush1.msra.mxu0 0.0
    %1085 = vmatprep.subr.mxu0 0.0
    %1086 = vmatpush1.msra.mxu0 0.0
    %1087 = vmatprep.subr.mxu0 0.0
    %1088 = vmatpush1.msra.mxu0 0.0
    %1089 = vmatprep.subr.mxu0 0.0
    %1090 = vmatpush1.msra.mxu0 0.0
    %1091 = vmatprep.subr.mxu0 0.0
    %1092 = vmatpush1.msra.mxu0 0.0
    %1093 = vmatprep.subr.mxu0 0.0
    %1094 = vmatpush1.msra.mxu0 0.0
    %1095 = vmatprep.subr.mxu0 0.0
    %1096 = vmatpush1.msra.mxu0 0.0
    %1097 = vmatprep.subr.mxu0 0.0
    %1098 = vmatpush1.msra.mxu0 0.0
    %1099 = vmatprep.subr.mxu0 0.0
    %1100 = vmatpush1.msra.mxu0 0.0
    %1101 = vmatprep.subr.mxu0 0.0
    %1102 = vmatpush1.msra.mxu0 0.0
    %1103 = vmatprep.subr.mxu0 0.0
    %1104 = vmatpush1.msra.mxu0 0.0
    %1105 = vmatprep.subr.mxu0 0.0
    %1106 = vmatpush1.msra.mxu0 0.0
    %1107 = vmatprep.subr.mxu0 0.0
    %1108 = vmatpush1.msra.mxu0 0.0
    %1109 = vmatprep.subr.mxu0 0.0
    %1110 = vmatpush1.msra.mxu0 0.0
    %1111 = vmatprep.subr.mxu0 0.0
    %1112 = vmatpush1.msra.mxu0 0.0
    %1113 = vmatprep.subr.mxu0 0.0
    %1114 = vmatpush1.msra.mxu0 0.0
    %1115 = vmatprep.subr.mxu0 0.0
    %1116 = vmatpush1.msra.mxu0 0.0
    %1117 = vmatprep.subr.mxu0 0.0
    %1118 = vmatpush1.msra.mxu0 0.0
    %1119 = vmatprep.subr.mxu0 0.0
    %1120 = vmatpush1.msra.mxu0 0.0
    %1121 = vmatprep.subr.mxu0 0.0
    %1122 = vmatpush1.msra.mxu0 0.0
    %1123 = vmatprep.subr.mxu0 0.0
    %1124 = vmatpush1.msra.mxu0 0.0
    %1125 = vmatprep.subr.mxu0 0.0
    %1126 = vmatpush1.msra.mxu0 0.0
    %1127 = vmatprep.subr.mxu0 0.0
    %1128 = vmatpush1.msra.mxu0 0.0
    %1129 = vmatprep.subr.mxu0 0.0
    %1130 = vmatpush1.msra.mxu0 0.0
    %1131 = vmatprep.subr.mxu0 0.0
    %1132 = vmatpush1.msra.mxu0 0.0
    %1133 = vmatprep.subr.mxu0 0.0
    %1134 = vmatpush1.msra.mxu0 0.0
    %1135 = vmatprep.subr.mxu0 0.0
    %1136 = vmatpush1.msra.mxu0 0.0
    %1137 = vmatprep.subr.mxu0 0.0
    %1138 = vmatpush1.msra.mxu0 0.0
    %1139 = vmatprep.mubr.f32.mxu0 0.0
    %1140 = vmatmul.mubr.f32.gmra.mrb[0].mxu0 %v1073
    %v1141 = vpop.f32.mrb[0].mxu0
    %v1142 = vadd.f32 %v1068, %v1141
    %v1143 = vpop.f32.mrb[0].mxu0
    %1144 = vdwg.mxu0
    %vm1145 = vcmp.gt.f32.partialorder %v1142, 0.0
    %v1146 = vmul.f32 %v1142, 0.2
    %v1147 = vsel %vm1145, %v1142, %v1146
    %1148 = vst.msk [vmem:[#allocation5] sm:$0xff] %vm198, %v1147
    %v1149 = vld [vmem:[%s7] sm:$0xff]
    %v1150 = vld [vmem:[%s7 + $0x8] sm:$0xff]
    %v1151 = vld [vmem:[%s7 + $0x10] sm:$0xff]
    %v1152 = vld [vmem:[%s7 + $0x18] sm:$0xff]
    %v1153 = vld [vmem:[%s8] sm:$0x1]
    %v1155 = vlaneseq
    %v1156 = vshrl.u32 %v1155, 7
    %v1157 = vsub.s32 0, %v1156
    %v1158 = vrot.slane %v1153, %v1157
    %v1161 = vsel %vm198, %v1147, 0
    %1163 = vmatprep.subr.mxu0 0.0
    %1164 = vmatpush1.msra.mxu0 %v1149
    %1165 = vmatprep.subr.mxu0 0.0
    %1166 = vmatpush1.msra.mxu0 %v1150
    %1167 = vmatprep.subr.mxu0 0.0
    %1168 = vmatpush1.msra.mxu0 %v1151
    %1169 = vmatprep.subr.mxu0 0.0
    %1170 = vmatpush1.msra.mxu0 %v1152
    %1171 = vmatprep.subr.mxu0 0.0
    %1172 = vmatpush1.msra.mxu0 0.0
    %1173 = vmatprep.subr.mxu0 0.0
    %1174 = vmatpush1.msra.mxu0 0.0
    %1175 = vmatprep.subr.mxu0 0.0
    %1176 = vmatpush1.msra.mxu0 0.0
    %1177 = vmatprep.subr.mxu0 0.0
    %1178 = vmatpush1.msra.mxu0 0.0
    %1179 = vmatprep.subr.mxu0 0.0
    %1180 = vmatpush1.msra.mxu0 0.0
    %1181 = vmatprep.subr.mxu0 0.0
    %1182 = vmatpush1.msra.mxu0 0.0
    %1183 = vmatprep.subr.mxu0 0.0
    %1184 = vmatpush1.msra.mxu0 0.0
    %1185 = vmatprep.subr.mxu0 0.0
    %1186 = vmatpush1.msra.mxu0 0.0
    %1187 = vmatprep.subr.mxu0 0.0
    %1188 = vmatpush1.msra.mxu0 0.0
    %1189 = vmatprep.subr.mxu0 0.0
    %1190 = vmatpush1.msra.mxu0 0.0
    %1191 = vmatprep.subr.mxu0 0.0
    %1192 = vmatpush1.msra.mxu0 0.0
    %1193 = vmatprep.subr.mxu0 0.0
    %1194 = vmatpush1.msra.mxu0 0.0
    %1195 = vmatprep.subr.mxu0 0.0
    %1196 = vmatpush1.msra.mxu0 0.0
    %1197 = vmatprep.subr.mxu0 0.0
    %1198 = vmatpush1.msra.mxu0 0.0
    %1199 = vmatprep.subr.mxu0 0.0
    %1200 = vmatpush1.msra.mxu0 0.0
    %1201 = vmatprep.subr.mxu0 0.0
    %1202 = vmatpush1.msra.mxu0 0.0
    %1203 = vmatprep.subr.mxu0 0.0
    %1204 = vmatpush1.msra.mxu0 0.0
    %1205 = vmatprep.subr.mxu0 0.0
    %1206 = vmatpush1.msra.mxu0 0.0
    %1207 = vmatprep.subr.mxu0 0.0
    %1208 = vmatpush1.msra.mxu0 0.0
    %1209 = vmatprep.subr.mxu0 0.0
    %1210 = vmatpush1.msra.mxu0 0.0
    %1211 = vmatprep.subr.mxu0 0.0
    %1212 = vmatpush1.msra.mxu0 0.0
    %1213 = vmatprep.subr.mxu0 0.0
    %1214 = vmatpush1.msra.mxu0 0.0
    %1215 = vmatprep.subr.mxu0 0.0
    %1216 = vmatpush1.msra.mxu0 0.0
    %1217 = vmatprep.subr.mxu0 0.0
    %1218 = vmatpush1.msra.mxu0 0.0
    %1219 = vmatprep.subr.mxu0 0.0
    %1220 = vmatpush1.msra.mxu0 0.0
    %1221 = vmatprep.subr.mxu0 0.0
    %1222 = vmatpush1.msra.mxu0 0.0
    %1223 = vmatprep.subr.mxu0 0.0
    %1224 = vmatpush1.msra.mxu0 0.0
    %1225 = vmatprep.subr.mxu0 0.0
    %1226 = vmatpush1.msra.mxu0 0.0
    %1227 = vmatprep.mubr.f32.mxu0 0.0
    %1228 = vmatmul.mubr.f32.gmra.mrb[0].mxu0 %v1161
    %v1229 = vpop.f32.mrb[0].mxu0
    %v1230 = vadd.f32 %v1158, %v1229
    %v1231 = vpop.f32.mrb[0].mxu0
    %1232 = vdwg.mxu0
    %vm1233 = vcmask 64512
    %1234 = vst.msk [vmem:[#allocation3] sm:$0xff] %vm1233, %v1230
    // Predicated region
    $region38: #{tpu_custom_call.1} parent=1 // pred_check
      _
    $region39: #{tpu_custom_call.1} parent=1 // pred_check_branch
      %1236 = sbr.rel (0) target = $region41
    $region40: #{tpu_custom_call.1} parent=1 // pred_region
      %s1238 = ssub.s32 128, 128
      %1239 = vsyncadd [#allocation4], %s1238
      %s1241 = sshll.u32 [#allocation3], 4
      %s1242 = int_to_ptr.vmem [resolvable:$true] %s1241
      %1244 = dma.vmem_to_hbm [thread:$0]  %s1242, 128, %s9, [#allocation4]
    $region41: #{tpu_custom_call.1} parent=1 // pred_fallthru
      _
    // Predicated region
    $region42: #{tpu_custom_call.1} parent=1 // pred_check
      _
    $region43: #{tpu_custom_call.1} parent=1 // pred_check_branch
      %1246 = sbr.rel (0) target = $region45
    $region44: #{tpu_custom_call.1} parent=1 // pred_region
      %s1248 = ssub.s32 128, 128
      %1249 = vsyncadd [#allocation6], %s1248
      %s1251 = sshll.u32 [#allocation5], 4
      %s1252 = int_to_ptr.vmem [resolvable:$true] %s1251
      %1254 = dma.vmem_to_hbm [thread:$0]  %s1252, 128, %s10, [#allocation6]
    $region45: #{tpu_custom_call.1} parent=1 // pred_fallthru
      _
    // Predicated region
    $region46: #{tpu_custom_call.1} parent=1 // pred_check
      _
    $region47: #{tpu_custom_call.1} parent=1 // pred_check_branch
      %1256 = sbr.rel (0) target = $region49
    $region48: #{tpu_custom_call.1} parent=1 // pred_region
      %1257 = dma.done [#allocation4], 128
    $region49: #{tpu_custom_call.1} parent=1 // pred_fallthru
      _
    // Predicated region
    $region50: #{tpu_custom_call.1} parent=1 // pred_check
      _
    $region51: #{tpu_custom_call.1} parent=1 // pred_check_branch
      %1259 = sbr.rel (0) target = $region53
    $region52: #{tpu_custom_call.1} parent=1 // pred_region
      %1260 = dma.done [#allocation6], 128
    $region53: #{tpu_custom_call.1} parent=1 // pred_fallthru
      _
    %1261 = vsyncpa [#allocation4], 1
    %1262 = vsyncpa [#allocation6], 1

</llo_original>
